<compile_context>
chip_gen: v7x
topology: tpu7x:2x2x1
jax: 0.10.0
libtpu: 0.0.40
codegen_flags: <defaults>
</compile_context>

<pallas_src>
import functools

import jax
import jax.numpy as jnp
from jax import lax
from jax.experimental import pallas as pl
from jax.experimental.pallas import tpu as pltpu

K = 3        # conv kernel_size (fixed by the module)
C_OUT = 32   # encoder output channels (fixed by the module)
LANE = 128   # TPU lane width


# --------------------------------------------------------------------------
# Pallas kernel: one grid step == bt batch elements
# --------------------------------------------------------------------------
def bnn_attention_kernel(x_ref, wcat_ref, bcat_ref, uomega_ref, mask_ref,
                         wfc_ref, bfc_ref, out_ref, *, bt, tp, co):
    # x_ref:      (bt, tp+8, Cin) bf16   padded input block (zeros past T / B)
    # wcat_ref:   (K*Cin, 2*co)   bf16   [Wc | Wc @ w_omega]
    # bcat_ref:   (1, 2*co)       f32    [b_conv | b_conv @ w_omega]
    # uomega_ref: (1, co)         f32
    # mask_ref:   (tp, 1)         f32    0 for valid conv steps, -1e30 otherwise
    # wfc_ref:    (co, NCP)       f32    class dim zero-padded to 128 lanes
    # bfc_ref:    (1, NCP)        f32    padded class lanes carry -1e30
    # out_ref:    (bt, NCP)       f32
    cin = x_ref.shape[-1]

    # ---- in-kernel im2col (3 shifted time views, concatenated on channels) --
    xb = x_ref[...].astype(jnp.float32)                       # (bt, tp+8, Cin)
    patches = jnp.concatenate([xb[:, k:k + tp, :] for k in range(K)], axis=-1)
    patches = patches.reshape(bt * tp, K * cin).astype(jnp.bfloat16)

    # ---- fused BBBConv1d + omega projection: one bf16 MXU matmul ------------
    hu = jnp.dot(patches, wcat_ref[...],
                 preferred_element_type=jnp.float32) + bcat_ref[...]  # (bt*tp, 2co)
    h = hu[:, :co]                                             # conv output
    u = jnp.tanh(hu[:, co:])                                   # attention proj

    # ---- attention scores + per-batch softmax over valid time steps (f32) ---
    att = jnp.sum(u * uomega_ref[...], axis=-1, keepdims=True)  # (bt*tp, 1)
    att3 = att.reshape(bt, tp, 1) + mask_ref[...]                # mask conv tail / pad
    att3 = att3 - jnp.max(att3, axis=1, keepdims=True)
    e = jnp.exp(att3)
    score = e * pl.reciprocal(jnp.sum(e, axis=1, keepdims=True),
                              approx=True)                       # (bt, tp, 1)

    # ---- attention-weighted pooling -----------------------------------------
    feat = jnp.sum(h.reshape(bt, tp, co) * score, axis=1)        # (bt, co)

    # ---- BBBLinear + exact class softmax (user-visible probabilities) -------
    logits = jnp.dot(feat, wfc_ref[...],
                     preferred_element_type=jnp.float32) + bfc_ref[...]
    logits = logits - jnp.max(logits, axis=-1, keepdims=True)
    pcls = jnp.exp(logits)
    out_ref[...] = pcls / jnp.sum(pcls, axis=-1, keepdims=True)  # (bt, NCP)


# --------------------------------------------------------------------------
# Wrapper: weight fusion / padding in plain JAX, everything hot in Pallas
# --------------------------------------------------------------------------
def bnn_attention_forward(x, w_conv, b_conv, w_omega, u_omega, w_fc, b_fc,
                          *, batch_tile=128):
    """x: (B, T, C_in); params in PyTorch layouts:
    w_conv (32, C_in, K), b_conv (32,), w_omega (32, 32), u_omega (32, 1),
    w_fc (nc, 32), b_fc (nc,).  Returns (B, nc) class probabilities."""
    B, T, Cin = x.shape
    co = w_conv.shape[0]
    nc = w_fc.shape[0]
    L = T - K + 1                          # "valid" conv output length

    # tile sizes: big batch tiles amortize per-step overhead; stay 8-aligned
    bt = 8 * pl.cdiv(max(int(batch_tile), 1), 8)
    bt = min(bt, 8 * pl.cdiv(B, 8))        # don't over-pad tiny batches
    bp = pl.cdiv(B, bt) * bt               # padded batch
    tp = 8 * pl.cdiv(T, 8)                 # padded time
    tpx = tp + 8                           # slack rows so shifted views stay in-bounds
    ncp = pl.cdiv(nc, LANE) * LANE         # lane-padded class dim (>=128)

    # input block: bf16 in HBM (half the DMA bytes, bf16 MXU operand)
    x_pad = jnp.zeros((bp, tpx, Cin), jnp.bfloat16)
    x_pad = x_pad.at[:B, :T, :].set(x.astype(jnp.bfloat16))

    # fused conv + omega weight: W_cat = [Wc | Wc @ w_omega], b_cat likewise
    wc = jnp.transpose(w_conv, (2, 1, 0)).reshape(K * Cin, co).astype(jnp.float32)
    w_om = w_omega.astype(jnp.float32)
    w_cat = jnp.concatenate([wc, wc @ w_om], axis=1).astype(jnp.bfloat16)  # (K*Cin, 2co)
    b_cat = jnp.concatenate([b_conv.astype(jnp.float32),
                             b_conv.astype(jnp.float32) @ w_om]).reshape(1, 2 * co)

    u_omega_row = u_omega.reshape(1, co).astype(jnp.float32)
    # precomputed additive time-validity mask (static): 0 valid, -1e30 invalid
    mask_add = jnp.where(jnp.arange(tp) < L, 0.0, -1e30).astype(jnp.float32)
    mask_add = mask_add.reshape(tp, 1)

    # class-padded fc: padded lanes get weight 0 and bias -1e30 so exp() == 0
    w_fc_pad = jnp.zeros((co, ncp), jnp.float32).at[:, :nc].set(
        w_fc.T.astype(jnp.float32))
    b_fc_pad = jnp.full((1, ncp), -1e30, jnp.float32).at[0, :nc].set(
        b_fc.astype(jnp.float32))

    flops = 2 * bp * tp * (K * Cin) * (2 * co) + 2 * bp * co * ncp
    transcendentals = bp * tp * (co + 1) + bp * ncp
    bytes_accessed = (int(x_pad.size) * 2 + int(w_cat.size) * 2
                      + int(w_fc_pad.size) * 4 + bp * ncp * 4)

    kernel = functools.partial(bnn_attention_kernel, bt=bt, tp=tp, co=co)
    out = pl.pallas_call(
        kernel,
        out_shape=jax.ShapeDtypeStruct((bp, ncp), jnp.float32),
        grid_spec=pltpu.PrefetchScalarGridSpec(
            num_scalar_prefetch=0,
            grid=(bp // bt,),
            in_specs=[
                pl.BlockSpec((bt, tpx, Cin), lambda i: (i, 0, 0)),
                pl.BlockSpec((K * Cin, 2 * co), lambda i: (0, 0)),
                pl.BlockSpec((1, 2 * co), lambda i: (0, 0)),
                pl.BlockSpec((1, co), lambda i: (0, 0)),
                pl.BlockSpec((tp, 1), lambda i: (0, 0)),
                pl.BlockSpec((co, ncp), lambda i: (0, 0)),
                pl.BlockSpec((1, ncp), lambda i: (0, 0)),
            ],
            out_specs=pl.BlockSpec((bt, ncp), lambda i: (i, 0)),
        ),
        compiler_params=pltpu.CompilerParams(
            dimension_semantics=("parallel",),      # shard batch tiles across TCs
            vmem_limit_bytes=32 * 1024 * 1024),
        cost_estimate=pl.CostEstimate(
            flops=flops, transcendentals=transcendentals,
            bytes_accessed=bytes_accessed),
    )(x_pad, w_cat, b_cat, u_omega_row, mask_add, w_fc_pad, b_fc_pad)
    return out[:B, :nc]


# --------------------------------------------------------------------------
# Plain-JAX glue: deterministic Bayesian parameter sampling + KL loss
# --------------------------------------------------------------------------
def _softplus(x):
    return jnp.log1p(jnp.exp(x))


def sample_bayes_param(key, shape, mu_init=(0.0, 0.1), rho_init=(-3.0, 0.1)):
    k_mu, k_rho, k_eps = jax.random.split(key, 3)
    mu = mu_init[0] + mu_init[1] * jax.random.normal(k_mu, shape, jnp.float32)
    rho = rho_init[0] + rho_init[1] * jax.random.normal(k_rho, shape, jnp.float32)
    sigma = _softplus(rho)
    eps = jax.random.normal(k_eps, shape, jnp.float32)
    w = mu + eps * sigma
    return w, mu, sigma


def kl_div(prior_mu, prior_sigma, mu, sigma):
    # TODO(synk): KL_DIV is defined outside the given module; standard
    # closed-form Gaussian KL (as in PyTorch-BayesianCNN calculate_kl) is used.
    return 0.5 * jnp.sum(
        2.0 * jnp.log(prior_sigma / sigma) - 1.0
        + (sigma / prior_sigma) ** 2
        + ((prior_mu - mu) / prior_sigma) ** 2
    )


def reference_forward(x, w_conv, b_conv, w_omega, u_omega, w_fc, b_fc):
    B, T, Cin = x.shape
    L = T - K + 1
    h = jnp.zeros((B, L, w_conv.shape[0]), jnp.float32) + b_conv
    for k in range(K):
        h = h + jnp.einsum('btc,oc->bto', x[:, k:k + L, :], w_conv[:, :, k])
    u = jnp.tanh(h @ w_omega)
    att = u @ u_omega
    att_score = jax.nn.softmax(att, axis=1)
    feat = jnp.sum(h * att_score, axis=1)
    return jax.nn.softmax(feat @ w_fc.T + b_fc, axis=1)


if __name__ == "__main__":
    B, T, C_in, num_classes = 12, 16, 4, 8
    prior_mu, prior_sigma = 0.0, 0.1

    root = jax.random.PRNGKey(0)
    k_x, k_cw, k_cb, k_fw, k_fb, k_wo, k_uo = jax.random.split(root, 7)

    # input: dense padded sequences, (B, T, C_in)   [see layout comment above]
    x = jax.random.normal(k_x, (B, T, C_in), jnp.float32)

    # BBBConv1d(in=C_in, out=32, k=3) sampled weights
    Wc, Wc_mu, Wc_sigma = sample_bayes_param(k_cw, (C_OUT, C_in, K))
    bc, bc_mu, bc_sigma = sample_bayes_param(k_cb, (C_OUT,))
    # BBBLinear(32, num_classes) sampled weights
    Wf, Wf_mu, Wf_sigma = sample_bayes_param(k_fw, (num_classes, C_OUT))
    bf, bf_mu, bf_sigma = sample_bayes_param(k_fb, (num_classes,))
    # attention parameters
    w_omega = jax.random.normal(k_wo, (C_OUT, C_OUT), jnp.float32) / 50.0
    u_omega = jax.random.normal(k_uo, (C_OUT, 1), jnp.float32) / 50.0

    # toy B=12 collapses to one grid step (bt=16); real batches keep >=2 steps
    out = bnn_attention_forward(x, Wc, bc, w_omega, u_omega, Wf, bf,
                                batch_tile=128)

    kl = (kl_div(prior_mu, prior_sigma, Wc_mu, Wc_sigma)
          + kl_div(prior_mu, prior_sigma, bc_mu, bc_sigma)
          + kl_div(prior_mu, prior_sigma, Wf_mu, Wf_sigma)
          + kl_div(prior_mu, prior_sigma, bf_mu, bf_sigma))

    out = jax.block_until_ready(out)
    kl = jax.block_until_ready(kl)

    ref = reference_forward(x, Wc, bc, w_omega, u_omega, Wf, bf)
    assert out.shape == (B, num_classes)
    assert bool(jnp.all(jnp.isfinite(out))) and bool(jnp.isfinite(kl))
    # bf16 MXU operands + approx reciprocal in the time softmax -> f32 reference
    # matched to ~1e-3; tolerance kept with margin
    assert jnp.allclose(out, ref, atol=1e-2, rtol=1e-2), "mismatch vs reference"

    print("KERNEL_OK")
</pallas_src>

<mosaic_0001>
module attributes {stable_mosaic.version = 11 : i64} {
  func.func @bnn_attention_kernel(%arg0: i32, %arg1: memref<16x24x4xbf16, #tpu.memory_space<vmem>>, %arg2: memref<12x64xbf16, #tpu.memory_space<vmem>>, %arg3: memref<1x64xf32, #tpu.memory_space<vmem>>, %arg4: memref<1x32xf32, #tpu.memory_space<vmem>>, %arg5: memref<16x1xf32, #tpu.memory_space<vmem>>, %arg6: memref<32x128xf32, #tpu.memory_space<vmem>>, %arg7: memref<1x128xf32, #tpu.memory_space<vmem>>, %arg8: memref<16x128xf32, #tpu.memory_space<vmem>>) attributes {dimension_semantics = [#tpu.dimension_semantics<parallel>], iteration_bounds = array<i64: 1>, scalar_prefetch = 0 : i64, scratch_operands = 0 : i64, tpu.core_type = #tpu.core_type<tc>, window_params = [{transform_indices = @transform_0, window_bounds = array<i64: 16, 24, 4>}, {pipeline_mode = #tpu.pipeline_mode<synchronous>, transform_indices = @transform_1, window_bounds = array<i64: 12, 64>}, {pipeline_mode = #tpu.pipeline_mode<synchronous>, transform_indices = @transform_2, window_bounds = array<i64: 1, 64>}, {pipeline_mode = #tpu.pipeline_mode<synchronous>, transform_indices = @transform_3, window_bounds = array<i64: 1, 32>}, {pipeline_mode = #tpu.pipeline_mode<synchronous>, transform_indices = @transform_4, window_bounds = array<i64: 16, 1>}, {pipeline_mode = #tpu.pipeline_mode<synchronous>, transform_indices = @transform_5, window_bounds = array<i64: 32, 128>}, {pipeline_mode = #tpu.pipeline_mode<synchronous>, transform_indices = @transform_6, window_bounds = array<i64: 1, 128>}, {transform_indices = @transform_7, window_bounds = array<i64: 16, 128>}]} {
    %c0 = arith.constant 0 : index
    %c0_0 = arith.constant 0 : index
    %c0_1 = arith.constant 0 : index
    %0 = vector.load %arg1[%c0, %c0_0, %c0_1] : memref<16x24x4xbf16, #tpu.memory_space<vmem>>, vector<16x24x4xbf16>
    %1 = arith.extf %0 : vector<16x24x4xbf16> to vector<16x24x4xf32>
    %2 = vector.extract_strided_slice %1 {offsets = [0, 0, 0], sizes = [16, 16, 4], strides = [1, 1, 1]} : vector<16x24x4xf32> to vector<16x16x4xf32>
    %3 = vector.extract_strided_slice %1 {offsets = [0, 1, 0], sizes = [16, 16, 4], strides = [1, 1, 1]} : vector<16x24x4xf32> to vector<16x16x4xf32>
    %4 = vector.extract_strided_slice %1 {offsets = [0, 2, 0], sizes = [16, 16, 4], strides = [1, 1, 1]} : vector<16x24x4xf32> to vector<16x16x4xf32>
    %5 = tpu.concatenate %2, %3, %4 in 2 : vector<16x16x4xf32>, vector<16x16x4xf32>, vector<16x16x4xf32> -> vector<16x16x12xf32>
    %6 = vector.shape_cast %5 : vector<16x16x12xf32> to vector<256x12xf32>
    %7 = arith.truncf %6 : vector<256x12xf32> to vector<256x12xbf16>
    %c0_2 = arith.constant 0 : index
    %c0_3 = arith.constant 0 : index
    %8 = vector.load %arg2[%c0_2, %c0_3] : memref<12x64xbf16, #tpu.memory_space<vmem>>, vector<12x64xbf16>
    %cst = arith.constant dense<0.000000e+00> : vector<256x64xf32>
    %9 = tpu.matmul %7, %8, %cst {dimension_numbers = #tpu.dot_dimension_numbers<[1], [0], [0], [1], [0, 0, 1, 1], [], []>} : vector<256x12xbf16>, vector<12x64xbf16>, vector<256x64xf32> -> vector<256x64xf32>
    %c0_4 = arith.constant 0 : index
    %c0_5 = arith.constant 0 : index
    %10 = vector.load %arg3[%c0_4, %c0_5] : memref<1x64xf32, #tpu.memory_space<vmem>>, vector<1x64xf32>
    %11 = vector.broadcast %10 : vector<1x64xf32> to vector<256x64xf32>
    %12 = arith.addf %9, %11 : vector<256x64xf32>
    %13 = vector.extract_strided_slice %12 {offsets = [0, 0], sizes = [256, 32], strides = [1, 1]} : vector<256x64xf32> to vector<256x32xf32>
    %14 = vector.extract_strided_slice %12 {offsets = [0, 32], sizes = [256, 32], strides = [1, 1]} : vector<256x64xf32> to vector<256x32xf32>
    %15 = math.tanh %14 : vector<256x32xf32>
    %c0_6 = arith.constant 0 : index
    %c0_7 = arith.constant 0 : index
    %16 = vector.load %arg4[%c0_6, %c0_7] : memref<1x32xf32, #tpu.memory_space<vmem>>, vector<1x32xf32>
    %17 = vector.broadcast %16 : vector<1x32xf32> to vector<256x32xf32>
    %18 = arith.mulf %15, %17 : vector<256x32xf32>
    %cst_8 = arith.constant dense<0.000000e+00> : vector<256xf32>
    %19 = vector.multi_reduction <add>, %18, %cst_8 [1] : vector<256x32xf32> to vector<256xf32>
    %20 = vector.shape_cast %19 : vector<256xf32> to vector<256x1xf32>
    %21 = vector.shape_cast %20 : vector<256x1xf32> to vector<16x16x1xf32>
    %c0_9 = arith.constant 0 : index
    %c0_10 = arith.constant 0 : index
    %22 = vector.load %arg5[%c0_9, %c0_10] : memref<16x1xf32, #tpu.memory_space<vmem>>, vector<16x1xf32>
    %23 = vector.shape_cast %22 : vector<16x1xf32> to vector<1x16x1xf32>
    %24 = vector.broadcast %23 : vector<1x16x1xf32> to vector<16x16x1xf32>
    %25 = arith.addf %21, %24 : vector<16x16x1xf32>
    %cst_11 = arith.constant dense<0xFF800000> : vector<16x1xf32>
    %26 = vector.multi_reduction <maximumf>, %25, %cst_11 [1] : vector<16x16x1xf32> to vector<16x1xf32>
    %27 = vector.shape_cast %26 : vector<16x1xf32> to vector<16x1x1xf32>
    %28 = vector.broadcast %27 : vector<16x1x1xf32> to vector<16x16x1xf32>
    %29 = arith.subf %25, %28 : vector<16x16x1xf32>
    %30 = math.exp %29 : vector<16x16x1xf32>
    %cst_12 = arith.constant dense<0.000000e+00> : vector<16x1xf32>
    %31 = vector.multi_reduction <add>, %30, %cst_12 [1] : vector<16x16x1xf32> to vector<16x1xf32>
    %32 = vector.shape_cast %31 : vector<16x1xf32> to vector<16x1x1xf32>
    %33 = tpu.reciprocal %32 {approx = true} : vector<16x1x1xf32> -> vector<16x1x1xf32>
    %34 = vector.broadcast %33 : vector<16x1x1xf32> to vector<16x16x1xf32>
    %35 = arith.mulf %30, %34 : vector<16x16x1xf32>
    %36 = vector.shape_cast %13 : vector<256x32xf32> to vector<16x16x32xf32>
    %37 = vector.broadcast %35 : vector<16x16x1xf32> to vector<16x16x32xf32>
    %38 = arith.mulf %36, %37 : vector<16x16x32xf32>
    %cst_13 = arith.constant dense<0.000000e+00> : vector<16x32xf32>
    %39 = vector.multi_reduction <add>, %38, %cst_13 [1] : vector<16x16x32xf32> to vector<16x32xf32>
    %c0_14 = arith.constant 0 : index
    %c0_15 = arith.constant 0 : index
    %40 = vector.load %arg6[%c0_14, %c0_15] : memref<32x128xf32, #tpu.memory_space<vmem>>, vector<32x128xf32>
    %cst_16 = arith.constant dense<0.000000e+00> : vector<16x128xf32>
    %41 = tpu.matmul %39, %40, %cst_16 {dimension_numbers = #tpu.dot_dimension_numbers<[1], [0], [0], [1], [0, 0, 1, 1], [], []>} : vector<16x32xf32>, vector<32x128xf32>, vector<16x128xf32> -> vector<16x128xf32>
    %c0_17 = arith.constant 0 : index
    %c0_18 = arith.constant 0 : index
    %42 = vector.load %arg7[%c0_17, %c0_18] : memref<1x128xf32, #tpu.memory_space<vmem>>, vector<1x128xf32>
    %43 = vector.broadcast %42 : vector<1x128xf32> to vector<16x128xf32>
    %44 = arith.addf %41, %43 : vector<16x128xf32>
    %cst_19 = arith.constant dense<0xFF800000> : vector<16xf32>
    %45 = vector.multi_reduction <maximumf>, %44, %cst_19 [1] : vector<16x128xf32> to vector<16xf32>
    %46 = vector.shape_cast %45 : vector<16xf32> to vector<16x1xf32>
    %47 = vector.broadcast %46 : vector<16x1xf32> to vector<16x128xf32>
    %48 = arith.subf %44, %47 : vector<16x128xf32>
    %49 = math.exp %48 : vector<16x128xf32>
    %cst_20 = arith.constant dense<0.000000e+00> : vector<16xf32>
    %50 = vector.multi_reduction <add>, %49, %cst_20 [1] : vector<16x128xf32> to vector<16xf32>
    %51 = vector.shape_cast %50 : vector<16xf32> to vector<16x1xf32>
    %52 = vector.broadcast %51 : vector<16x1xf32> to vector<16x128xf32>
    %53 = arith.divf %49, %52 : vector<16x128xf32>
    %c0_21 = arith.constant 0 : index
    %c0_22 = arith.constant 0 : index
    %54 = vector.load %arg8[%c0_21, %c0_22] : memref<16x128xf32, #tpu.memory_space<vmem>>, vector<16x128xf32>
    tpu.vector_store %arg8[%c0_21, %c0_22], %53 {strides = array<i32>} : memref<16x128xf32, #tpu.memory_space<vmem>>, vector<16x128xf32>,
    return
  }
  func.func @transform_0(%arg0: i32) -> (i32, i32, i32) {
    %c0_i32 = arith.constant 0 : i32
    %c0_i32_0 = arith.constant 0 : i32
    %c0_i32_1 = arith.constant 0 : i32
    return %arg0, %c0_i32, %c0_i32_0 : i32, i32, i32
  }
  func.func @transform_1(%arg0: i32) -> (i32, i32) {
    %c0_i32 = arith.constant 0 : i32
    %c0_i32_0 = arith.constant 0 : i32
    %c0_i32_1 = arith.constant 0 : i32
    return %c0_i32, %c0_i32_0 : i32, i32
  }
  func.func @transform_2(%arg0: i32) -> (i32, i32) {
    %c0_i32 = arith.constant 0 : i32
    %c0_i32_0 = arith.constant 0 : i32
    %c0_i32_1 = arith.constant 0 : i32
    return %c0_i32, %c0_i32_0 : i32, i32
  }
  func.func @transform_3(%arg0: i32) -> (i32, i32) {
    %c0_i32 = arith.constant 0 : i32
    %c0_i32_0 = arith.constant 0 : i32
    %c0_i32_1 = arith.constant 0 : i32
    return %c0_i32, %c0_i32_0 : i32, i32
  }
  func.func @transform_4(%arg0: i32) -> (i32, i32) {
    %c0_i32 = arith.constant 0 : i32
    %c0_i32_0 = arith.constant 0 : i32
    %c0_i32_1 = arith.constant 0 : i32
    return %c0_i32, %c0_i32_0 : i32, i32
  }
  func.func @transform_5(%arg0: i32) -> (i32, i32) {
    %c0_i32 = arith.constant 0 : i32
    %c0_i32_0 = arith.constant 0 : i32
    %c0_i32_1 = arith.constant 0 : i32
    return %c0_i32, %c0_i32_0 : i32, i32
  }
  func.func @transform_6(%arg0: i32) -> (i32, i32) {
    %c0_i32 = arith.constant 0 : i32
    %c0_i32_0 = arith.constant 0 : i32
    %c0_i32_1 = arith.constant 0 : i32
    return %c0_i32, %c0_i32_0 : i32, i32
  }
  func.func @transform_7(%arg0: i32) -> (i32, i32) {
    %c0_i32 = arith.constant 0 : i32
    %c0_i32_0 = arith.constant 0 : i32
    return %arg0, %c0_i32 : i32, i32
  }
}

</mosaic_0001>

<llo_original>
// kernel: tpu_custom_call.1
$region0: #{tpu_custom_call.1}
  #allocation0 [shape = 'u32[]', space=smem, size = 0x4, offset = 0x4, fixed_abs, tag = 'smem constant byte address 0x4 - core index']
  #allocation1 [shape = 'u32[144,128]{1,0:T(1,128)}', space=vmem, size = 0x12000, scoped, tag = 'internal scratch']
  %s0 = inlined_call_operand.vmem [shape: bf16[16,24,4], index: 0, kind: input, shape index: {}]
  %s1 = inlined_call_operand.vmem [shape: bf16[12,64], index: 1, kind: input, shape index: {}]
  %s2 = inlined_call_operand.vmem [shape: f32[1,64], index: 2, kind: input, shape index: {}]
  %s3 = inlined_call_operand.vmem [shape: f32[1,32], index: 3, kind: input, shape index: {}]
  %s4 = inlined_call_operand.vmem [shape: f32[16,1], index: 4, kind: input, shape index: {}]
  %s5 = inlined_call_operand.vmem [shape: f32[32,128], index: 5, kind: input, shape index: {}]
  %s6 = inlined_call_operand.vmem [shape: f32[1,128], index: 6, kind: input, shape index: {}]
  %s7 = inlined_call_operand.hbm [shape: f32[16,128], index: 7, kind: output, shape index: {}]
  %s8 = sld [smem:[#allocation0]]
  $region38: #{tpu_custom_call.1} parent=0
    _
  %s10 = ssub.s32 1, %s8
  %s11 = scalar_select 0, %s10, %s8
  $region1: #{tpu_custom_call.1} parent=0
    #allocation2 [shape = 'u8[8192]{0}', space=vmem, size = 0x2000, scoped, tag = 'output window, operand 0, single buffered']
    #allocation3 [shape = 's32[1]{0}', space=sflag, size = 0x4, scoped, tag = 'scoped memory for tpu_custom_call.1']
    %12 = vsyncpa [#allocation3], 0
    // Predicated region
    $region2: #{tpu_custom_call.1} parent=1 // pred_check
      _
    $region3: #{tpu_custom_call.1} parent=1 // pred_check_branch
      %14 = sbr.rel (0) target = $region5
    $region4: #{tpu_custom_call.1} parent=1 // pred_region
      _
    $region5: #{tpu_custom_call.1} parent=1 // pred_fallthru
      _
    // Predicated region
    $region6: #{tpu_custom_call.1} parent=1 // pred_check
      _
    $region7: #{tpu_custom_call.1} parent=1 // pred_check_branch
      %16 = sbr.rel (0) target = $region9
    $region8: #{tpu_custom_call.1} parent=1 // pred_region
      _
    $region9: #{tpu_custom_call.1} parent=1 // pred_fallthru
      _
    // Predicated region
    $region10: #{tpu_custom_call.1} parent=1 // pred_check
      _
    $region11: #{tpu_custom_call.1} parent=1 // pred_check_branch
      %18 = sbr.rel (0) target = $region13
    $region12: #{tpu_custom_call.1} parent=1 // pred_region
      _
    $region13: #{tpu_custom_call.1} parent=1 // pred_fallthru
      _
    // Predicated region
    $region14: #{tpu_custom_call.1} parent=1 // pred_check
      _
    $region15: #{tpu_custom_call.1} parent=1 // pred_check_branch
      %20 = sbr.rel (0) target = $region17
    $region16: #{tpu_custom_call.1} parent=1 // pred_region
      _
    $region17: #{tpu_custom_call.1} parent=1 // pred_fallthru
      _
    // Predicated region
    $region18: #{tpu_custom_call.1} parent=1 // pred_check
      _
    $region19: #{tpu_custom_call.1} parent=1 // pred_check_branch
      %22 = sbr.rel (0) target = $region21
    $region20: #{tpu_custom_call.1} parent=1 // pred_region
      _
    $region21: #{tpu_custom_call.1} parent=1 // pred_fallthru
      _
    // Predicated region
    $region22: #{tpu_custom_call.1} parent=1 // pred_check
      _
    $region23: #{tpu_custom_call.1} parent=1 // pred_check_branch
      %24 = sbr.rel (0) target = $region25
    $region24: #{tpu_custom_call.1} parent=1 // pred_region
      _
    $region25: #{tpu_custom_call.1} parent=1 // pred_fallthru
      _
    // Predicated region
    $region26: #{tpu_custom_call.1} parent=1 // pred_check
      _
    $region27: #{tpu_custom_call.1} parent=1 // pred_check_branch
      %26 = sbr.rel (0) target = $region29
    $region28: #{tpu_custom_call.1} parent=1 // pred_region
      _
    $region29: #{tpu_custom_call.1} parent=1 // pred_fallthru
      _
    %v28 = vld [vmem:[%s0] sm:$0xf]
    %v29 = vld [vmem:[%s0 + $0x4] sm:$0xf]
    %v30 = vld [vmem:[%s0 + $0x8] sm:$0xf]
    %v31 = vld [vmem:[%s0 + $0xc] sm:$0xf]
    %v32 = vld [vmem:[%s0 + $0x10] sm:$0xf]
    %v33 = vld [vmem:[%s0 + $0x14] sm:$0xf]
    %v34 = vld [vmem:[%s0 + $0x18] sm:$0xf]
    %v35 = vld [vmem:[%s0 + $0x1c] sm:$0xf]
    %v36 = vld [vmem:[%s0 + $0x20] sm:$0xf]
    %v37 = vld [vmem:[%s0 + $0x24] sm:$0xf]
    %v38 = vld [vmem:[%s0 + $0x28] sm:$0xf]
    %v39 = vld [vmem:[%s0 + $0x2c] sm:$0xf]
    %v40 = vld [vmem:[%s0 + $0x30] sm:$0xf]
    %v41 = vld [vmem:[%s0 + $0x34] sm:$0xf]
    %v42 = vld [vmem:[%s0 + $0x38] sm:$0xf]
    %v43 = vld [vmem:[%s0 + $0x3c] sm:$0xf]
    %v44 = vld [vmem:[%s0 + $0x40] sm:$0xf]
    %v45 = vld [vmem:[%s0 + $0x44] sm:$0xf]
    %v46 = vld [vmem:[%s0 + $0x48] sm:$0xf]
    %v47 = vld [vmem:[%s0 + $0x4c] sm:$0xf]
    %v48 = vld [vmem:[%s0 + $0x50] sm:$0xf]
    %v49 = vld [vmem:[%s0 + $0x54] sm:$0xf]
    %v50 = vld [vmem:[%s0 + $0x58] sm:$0xf]
    %v51 = vld [vmem:[%s0 + $0x5c] sm:$0xf]
    %v52 = vld [vmem:[%s0 + $0x60] sm:$0xf]
    %v53 = vld [vmem:[%s0 + $0x64] sm:$0xf]
    %v54 = vld [vmem:[%s0 + $0x68] sm:$0xf]
    %v55 = vld [vmem:[%s0 + $0x6c] sm:$0xf]
    %v56 = vld [vmem:[%s0 + $0x70] sm:$0xf]
    %v57 = vld [vmem:[%s0 + $0x74] sm:$0xf]
    %v58 = vld [vmem:[%s0 + $0x78] sm:$0xf]
    %v59 = vld [vmem:[%s0 + $0x7c] sm:$0xf]
    %v60 = vld [vmem:[%s0 + $0x80] sm:$0xf]
    %v61 = vld [vmem:[%s0 + $0x84] sm:$0xf]
    %v62 = vld [vmem:[%s0 + $0x88] sm:$0xf]
    %v63 = vld [vmem:[%s0 + $0x8c] sm:$0xf]
    %v64 = vld [vmem:[%s0 + $0x90] sm:$0xf]
    %v65 = vld [vmem:[%s0 + $0x94] sm:$0xf]
    %v66 = vld [vmem:[%s0 + $0x98] sm:$0xf]
    %v67 = vld [vmem:[%s0 + $0x9c] sm:$0xf]
    %v68 = vld [vmem:[%s0 + $0xa0] sm:$0xf]
    %v69 = vld [vmem:[%s0 + $0xa4] sm:$0xf]
    %v70 = vld [vmem:[%s0 + $0xa8] sm:$0xf]
    %v71 = vld [vmem:[%s0 + $0xac] sm:$0xf]
    %v72 = vld [vmem:[%s0 + $0xb0] sm:$0xf]
    %v73 = vld [vmem:[%s0 + $0xb4] sm:$0xf]
    %v74 = vld [vmem:[%s0 + $0xb8] sm:$0xf]
    %v75 = vld [vmem:[%s0 + $0xbc] sm:$0xf]
    %v76 = vunpack.c.l.bf16 %v28
    %v77 = vunpack.c.l.bf16 %v29
    %v78 = vunpack.c.l.bf16 %v30
    %v79 = vunpack.c.l.bf16 %v31
    %v80 = vunpack.c.l.bf16 %v32
    %v81 = vunpack.c.l.bf16 %v33
    %v82 = vunpack.c.l.bf16 %v34
    %v83 = vunpack.c.l.bf16 %v35
    %v84 = vunpack.c.l.bf16 %v36
    %v85 = vunpack.c.l.bf16 %v37
    %v86 = vunpack.c.l.bf16 %v38
    %v87 = vunpack.c.l.bf16 %v39
    %v88 = vunpack.c.l.bf16 %v40
    %v89 = vunpack.c.l.bf16 %v41
    %v90 = vunpack.c.l.bf16 %v42
    %v91 = vunpack.c.l.bf16 %v43
    %v92 = vunpack.c.l.bf16 %v44
    %v93 = vunpack.c.l.bf16 %v45
    %v94 = vunpack.c.l.bf16 %v46
    %v95 = vunpack.c.l.bf16 %v47
    %v96 = vunpack.c.l.bf16 %v48
    %v97 = vunpack.c.l.bf16 %v49
    %v98 = vunpack.c.l.bf16 %v50
    %v99 = vunpack.c.l.bf16 %v51
    %v100 = vunpack.c.l.bf16 %v52
    %v101 = vunpack.c.l.bf16 %v53
    %v102 = vunpack.c.l.bf16 %v54
    %v103 = vunpack.c.l.bf16 %v55
    %v104 = vunpack.c.l.bf16 %v56
    %v105 = vunpack.c.l.bf16 %v57
    %v106 = vunpack.c.l.bf16 %v58
    %v107 = vunpack.c.l.bf16 %v59
    %v108 = vunpack.c.l.bf16 %v60
    %v109 = vunpack.c.l.bf16 %v61
    %v110 = vunpack.c.l.bf16 %v62
    %v111 = vunpack.c.l.bf16 %v63
    %v112 = vunpack.c.l.bf16 %v64
    %v113 = vunpack.c.l.bf16 %v65
    %v114 = vunpack.c.l.bf16 %v66
    %v115 = vunpack.c.l.bf16 %v67
    %v116 = vunpack.c.l.bf16 %v68
    %v117 = vunpack.c.l.bf16 %v69
    %v118 = vunpack.c.l.bf16 %v70
    %v119 = vunpack.c.l.bf16 %v71
    %v120 = vunpack.c.l.bf16 %v72
    %v121 = vunpack.c.l.bf16 %v73
    %v122 = vunpack.c.l.bf16 %v74
    %v123 = vunpack.c.l.bf16 %v75
    %vm172 = vcmask 1046528
    %v173 = vrot.slane %v76, 1
    %v174 = vrot.slane %v77, 1
    %v175 = vsel %vm172, %v173, %v174
    %v176 = vrot.slane %v78, 1
    %v177 = vsel %vm172, %v174, %v176
    %v178 = vrot.slane %v79, 1
    %v179 = vrot.slane %v80, 1
    %v180 = vsel %vm172, %v178, %v179
    %v181 = vrot.slane %v81, 1
    %v182 = vsel %vm172, %v179, %v181
    %v183 = vrot.slane %v82, 1
    %v184 = vrot.slane %v83, 1
    %v185 = vsel %vm172, %v183, %v184
    %v186 = vrot.slane %v84, 1
    %v187 = vsel %vm172, %v184, %v186
    %v188 = vrot.slane %v85, 1
    %v189 = vrot.slane %v86, 1
    %v190 = vsel %vm172, %v188, %v189
    %v191 = vrot.slane %v87, 1
    %v192 = vsel %vm172, %v189, %v191
    %v193 = vrot.slane %v88, 1
    %v194 = vrot.slane %v89, 1
    %v195 = vsel %vm172, %v193, %v194
    %v196 = vrot.slane %v90, 1
    %v197 = vsel %vm172, %v194, %v196
    %v198 = vrot.slane %v91, 1
    %v199 = vrot.slane %v92, 1
    %v200 = vsel %vm172, %v198, %v199
    %v201 = vrot.slane %v93, 1
    %v202 = vsel %vm172, %v199, %v201
    %v203 = vrot.slane %v94, 1
    %v204 = vrot.slane %v95, 1
    %v205 = vsel %vm172, %v203, %v204
    %v206 = vrot.slane %v96, 1
    %v207 = vsel %vm172, %v204, %v206
    %v208 = vrot.slane %v97, 1
    %v209 = vrot.slane %v98, 1
    %v210 = vsel %vm172, %v208, %v209
    %v211 = vrot.slane %v99, 1
    %v212 = vsel %vm172, %v209, %v211
    %v213 = vrot.slane %v100, 1
    %v214 = vrot.slane %v101, 1
    %v215 = vsel %vm172, %v213, %v214
    %v216 = vrot.slane %v102, 1
    %v217 = vsel %vm172, %v214, %v216
    %v218 = vrot.slane %v103, 1
    %v219 = vrot.slane %v104, 1
    %v220 = vsel %vm172, %v218, %v219
    %v221 = vrot.slane %v105, 1
    %v222 = vsel %vm172, %v219, %v221
    %v223 = vrot.slane %v106, 1
    %v224 = vrot.slane %v107, 1
    %v225 = vsel %vm172, %v223, %v224
    %v226 = vrot.slane %v108, 1
    %v227 = vsel %vm172, %v224, %v226
    %v228 = vrot.slane %v109, 1
    %v229 = vrot.slane %v110, 1
    %v230 = vsel %vm172, %v228, %v229
    %v231 = vrot.slane %v111, 1
    %v232 = vsel %vm172, %v229, %v231
    %v233 = vrot.slane %v112, 1
    %v234 = vrot.slane %v113, 1
    %v235 = vsel %vm172, %v233, %v234
    %v236 = vrot.slane %v114, 1
    %v237 = vsel %vm172, %v234, %v236
    %v238 = vrot.slane %v115, 1
    %v239 = vrot.slane %v116, 1
    %v240 = vsel %vm172, %v238, %v239
    %v241 = vrot.slane %v117, 1
    %v242 = vsel %vm172, %v239, %v241
    %v243 = vrot.slane %v118, 1
    %v244 = vrot.slane %v119, 1
    %v245 = vsel %vm172, %v243, %v244
    %v246 = vrot.slane %v120, 1
    %v247 = vsel %vm172, %v244, %v246
    %v248 = vrot.slane %v121, 1
    %v249 = vrot.slane %v122, 1
    %v250 = vsel %vm172, %v248, %v249
    %v251 = vrot.slane %v123, 1
    %v252 = vsel %vm172, %v249, %v251
    %253 = vrot.lane.b32.xlu0 %v175, 4
    %v254 = vpop.permute.xlu0 %253
    %255 = vrot.lane.b32.xlu0 %v177, 4
    %v256 = vpop.permute.xlu0 %255
    %257 = vrot.lane.b32.xlu0 %v180, 4
    %v258 = vpop.permute.xlu0 %257
    %259 = vrot.lane.b32.xlu0 %v182, 4
    %v260 = vpop.permute.xlu0 %259
    %261 = vrot.lane.b32.xlu0 %v185, 4
    %v262 = vpop.permute.xlu0 %261
    %263 = vrot.lane.b32.xlu0 %v187, 4
    %v264 = vpop.permute.xlu0 %263
    %265 = vrot.lane.b32.xlu0 %v190, 4
    %v266 = vpop.permute.xlu0 %265
    %267 = vrot.lane.b32.xlu0 %v192, 4
    %v268 = vpop.permute.xlu0 %267
    %269 = vrot.lane.b32.xlu0 %v195, 4
    %v270 = vpop.permute.xlu0 %269
    %271 = vrot.lane.b32.xlu0 %v197, 4
    %v272 = vpop.permute.xlu0 %271
    %273 = vrot.lane.b32.xlu0 %v200, 4
    %v274 = vpop.permute.xlu0 %273
    %275 = vrot.lane.b32.xlu0 %v202, 4
    %v276 = vpop.permute.xlu0 %275
    %277 = vrot.lane.b32.xlu0 %v205, 4
    %v278 = vpop.permute.xlu0 %277
    %279 = vrot.lane.b32.xlu0 %v207, 4
    %v280 = vpop.permute.xlu0 %279
    %281 = vrot.lane.b32.xlu0 %v210, 4
    %v282 = vpop.permute.xlu0 %281
    %283 = vrot.lane.b32.xlu0 %v212, 4
    %v284 = vpop.permute.xlu0 %283
    %285 = vrot.lane.b32.xlu0 %v215, 4
    %v286 = vpop.permute.xlu0 %285
    %287 = vrot.lane.b32.xlu0 %v217, 4
    %v288 = vpop.permute.xlu0 %287
    %289 = vrot.lane.b32.xlu0 %v220, 4
    %v290 = vpop.permute.xlu0 %289
    %291 = vrot.lane.b32.xlu0 %v222, 4
    %v292 = vpop.permute.xlu0 %291
    %293 = vrot.lane.b32.xlu0 %v225, 4
    %v294 = vpop.permute.xlu0 %293
    %295 = vrot.lane.b32.xlu0 %v227, 4
    %v296 = vpop.permute.xlu0 %295
    %297 = vrot.lane.b32.xlu0 %v230, 4
    %v298 = vpop.permute.xlu0 %297
    %299 = vrot.lane.b32.xlu0 %v232, 4
    %v300 = vpop.permute.xlu0 %299
    %301 = vrot.lane.b32.xlu0 %v235, 4
    %v302 = vpop.permute.xlu0 %301
    %303 = vrot.lane.b32.xlu0 %v237, 4
    %v304 = vpop.permute.xlu0 %303
    %305 = vrot.lane.b32.xlu0 %v240, 4
    %v306 = vpop.permute.xlu0 %305
    %307 = vrot.lane.b32.xlu0 %v242, 4
    %v308 = vpop.permute.xlu0 %307
    %309 = vrot.lane.b32.xlu0 %v245, 4
    %v310 = vpop.permute.xlu0 %309
    %311 = vrot.lane.b32.xlu0 %v247, 4
    %v312 = vpop.permute.xlu0 %311
    %313 = vrot.lane.b32.xlu0 %v250, 4
    %v314 = vpop.permute.xlu0 %313
    %315 = vrot.lane.b32.xlu0 %v252, 4
    %v316 = vpop.permute.xlu0 %315
    %vm349 = vcmask 1045504
    %v350 = vrot.slane %v76, 2
    %v351 = vrot.slane %v77, 2
    %v352 = vsel %vm349, %v350, %v351
    %v353 = vrot.slane %v78, 2
    %v354 = vsel %vm349, %v351, %v353
    %v355 = vrot.slane %v79, 2
    %v356 = vrot.slane %v80, 2
    %v357 = vsel %vm349, %v355, %v356
    %v358 = vrot.slane %v81, 2
    %v359 = vsel %vm349, %v356, %v358
    %v360 = vrot.slane %v82, 2
    %v361 = vrot.slane %v83, 2
    %v362 = vsel %vm349, %v360, %v361
    %v363 = vrot.slane %v84, 2
    %v364 = vsel %vm349, %v361, %v363
    %v365 = vrot.slane %v85, 2
    %v366 = vrot.slane %v86, 2
    %v367 = vsel %vm349, %v365, %v366
    %v368 = vrot.slane %v87, 2
    %v369 = vsel %vm349, %v366, %v368
    %v370 = vrot.slane %v88, 2
    %v371 = vrot.slane %v89, 2
    %v372 = vsel %vm349, %v370, %v371
    %v373 = vrot.slane %v90, 2
    %v374 = vsel %vm349, %v371, %v373
    %v375 = vrot.slane %v91, 2
    %v376 = vrot.slane %v92, 2
    %v377 = vsel %vm349, %v375, %v376
    %v378 = vrot.slane %v93, 2
    %v379 = vsel %vm349, %v376, %v378
    %v380 = vrot.slane %v94, 2
    %v381 = vrot.slane %v95, 2
    %v382 = vsel %vm349, %v380, %v381
    %v383 = vrot.slane %v96, 2
    %v384 = vsel %vm349, %v381, %v383
    %v385 = vrot.slane %v97, 2
    %v386 = vrot.slane %v98, 2
    %v387 = vsel %vm349, %v385, %v386
    %v388 = vrot.slane %v99, 2
    %v389 = vsel %vm349, %v386, %v388
    %v390 = vrot.slane %v100, 2
    %v391 = vrot.slane %v101, 2
    %v392 = vsel %vm349, %v390, %v391
    %v393 = vrot.slane %v102, 2
    %v394 = vsel %vm349, %v391, %v393
    %v395 = vrot.slane %v103, 2
    %v396 = vrot.slane %v104, 2
    %v397 = vsel %vm349, %v395, %v396
    %v398 = vrot.slane %v105, 2
    %v399 = vsel %vm349, %v396, %v398
    %v400 = vrot.slane %v106, 2
    %v401 = vrot.slane %v107, 2
    %v402 = vsel %vm349, %v400, %v401
    %v403 = vrot.slane %v108, 2
    %v404 = vsel %vm349, %v401, %v403
    %v405 = vrot.slane %v109, 2
    %v406 = vrot.slane %v110, 2
    %v407 = vsel %vm349, %v405, %v406
    %v408 = vrot.slane %v111, 2
    %v409 = vsel %vm349, %v406, %v408
    %v410 = vrot.slane %v112, 2
    %v411 = vrot.slane %v113, 2
    %v412 = vsel %vm349, %v410, %v411
    %v413 = vrot.slane %v114, 2
    %v414 = vsel %vm349, %v411, %v413
    %v415 = vrot.slane %v115, 2
    %v416 = vrot.slane %v116, 2
    %v417 = vsel %vm349, %v415, %v416
    %v418 = vrot.slane %v117, 2
    %v419 = vsel %vm349, %v416, %v418
    %v420 = vrot.slane %v118, 2
    %v421 = vrot.slane %v119, 2
    %v422 = vsel %vm349, %v420, %v421
    %v423 = vrot.slane %v120, 2
    %v424 = vsel %vm349, %v421, %v423
    %v425 = vrot.slane %v121, 2
    %v426 = vrot.slane %v122, 2
    %v427 = vsel %vm349, %v425, %v426
    %v428 = vrot.slane %v123, 2
    %v429 = vsel %vm349, %v426, %v428
    %430 = vrot.lane.b32.xlu0 %v352, 8
    %v431 = vpop.permute.xlu0 %430
    %432 = vrot.lane.b32.xlu0 %v354, 8
    %v433 = vpop.permute.xlu0 %432
    %434 = vrot.lane.b32.xlu0 %v357, 8
    %v435 = vpop.permute.xlu0 %434
    %436 = vrot.lane.b32.xlu0 %v359, 8
    %v437 = vpop.permute.xlu0 %436
    %438 = vrot.lane.b32.xlu0 %v362, 8
    %v439 = vpop.permute.xlu0 %438
    %440 = vrot.lane.b32.xlu0 %v364, 8
    %v441 = vpop.permute.xlu0 %440
    %442 = vrot.lane.b32.xlu0 %v367, 8
    %v443 = vpop.permute.xlu0 %442
    %444 = vrot.lane.b32.xlu0 %v369, 8
    %v445 = vpop.permute.xlu0 %444
    %446 = vrot.lane.b32.xlu0 %v372, 8
    %v447 = vpop.permute.xlu0 %446
    %448 = vrot.lane.b32.xlu0 %v374, 8
    %v449 = vpop.permute.xlu0 %448
    %450 = vrot.lane.b32.xlu0 %v377, 8
    %v451 = vpop.permute.xlu0 %450
    %452 = vrot.lane.b32.xlu0 %v379, 8
    %v453 = vpop.permute.xlu0 %452
    %454 = vrot.lane.b32.xlu0 %v382, 8
    %v455 = vpop.permute.xlu0 %454
    %456 = vrot.lane.b32.xlu0 %v384, 8
    %v457 = vpop.permute.xlu0 %456
    %458 = vrot.lane.b32.xlu0 %v387, 8
    %v459 = vpop.permute.xlu0 %458
    %460 = vrot.lane.b32.xlu0 %v389, 8
    %v461 = vpop.permute.xlu0 %460
    %462 = vrot.lane.b32.xlu0 %v392, 8
    %v463 = vpop.permute.xlu0 %462
    %464 = vrot.lane.b32.xlu0 %v394, 8
    %v465 = vpop.permute.xlu0 %464
    %466 = vrot.lane.b32.xlu0 %v397, 8
    %v467 = vpop.permute.xlu0 %466
    %468 = vrot.lane.b32.xlu0 %v399, 8
    %v469 = vpop.permute.xlu0 %468
    %470 = vrot.lane.b32.xlu0 %v402, 8
    %v471 = vpop.permute.xlu0 %470
    %472 = vrot.lane.b32.xlu0 %v404, 8
    %v473 = vpop.permute.xlu0 %472
    %474 = vrot.lane.b32.xlu0 %v407, 8
    %v475 = vpop.permute.xlu0 %474
    %476 = vrot.lane.b32.xlu0 %v409, 8
    %v477 = vpop.permute.xlu0 %476
    %478 = vrot.lane.b32.xlu0 %v412, 8
    %v479 = vpop.permute.xlu0 %478
    %480 = vrot.lane.b32.xlu0 %v414, 8
    %v481 = vpop.permute.xlu0 %480
    %482 = vrot.lane.b32.xlu0 %v417, 8
    %v483 = vpop.permute.xlu0 %482
    %484 = vrot.lane.b32.xlu0 %v419, 8
    %v485 = vpop.permute.xlu0 %484
    %486 = vrot.lane.b32.xlu0 %v422, 8
    %v487 = vpop.permute.xlu0 %486
    %488 = vrot.lane.b32.xlu0 %v424, 8
    %v489 = vpop.permute.xlu0 %488
    %490 = vrot.lane.b32.xlu0 %v427, 8
    %v491 = vpop.permute.xlu0 %490
    %492 = vrot.lane.b32.xlu0 %v429, 8
    %v493 = vpop.permute.xlu0 %492
    %vm526 = vcmask 31744
    %v527 = vsel %vm526, %v76, %v254
    %v528 = vsel %vm526, %v77, %v256
    %v529 = vsel %vm526, %v79, %v258
    %v530 = vsel %vm526, %v80, %v260
    %v531 = vsel %vm526, %v82, %v262
    %v532 = vsel %vm526, %v83, %v264
    %v533 = vsel %vm526, %v85, %v266
    %v534 = vsel %vm526, %v86, %v268
    %v535 = vsel %vm526, %v88, %v270
    %v536 = vsel %vm526, %v89, %v272
    %v537 = vsel %vm526, %v91, %v274
    %v538 = vsel %vm526, %v92, %v276
    %v539 = vsel %vm526, %v94, %v278
    %v540 = vsel %vm526, %v95, %v280
    %v541 = vsel %vm526, %v97, %v282
    %v542 = vsel %vm526, %v98, %v284
    %v543 = vsel %vm526, %v100, %v286
    %v544 = vsel %vm526, %v101, %v288
    %v545 = vsel %vm526, %v103, %v290
    %v546 = vsel %vm526, %v104, %v292
    %v547 = vsel %vm526, %v106, %v294
    %v548 = vsel %vm526, %v107, %v296
    %v549 = vsel %vm526, %v109, %v298
    %v550 = vsel %vm526, %v110, %v300
    %v551 = vsel %vm526, %v112, %v302
    %v552 = vsel %vm526, %v113, %v304
    %v553 = vsel %vm526, %v115, %v306
    %v554 = vsel %vm526, %v116, %v308
    %v555 = vsel %vm526, %v118, %v310
    %v556 = vsel %vm526, %v119, %v312
    %v557 = vsel %vm526, %v121, %v314
    %v558 = vsel %vm526, %v122, %v316
    %vm559 = vcmask 64512
    %v560 = vsel %vm559, %v527, %v431
    %v561 = vsel %vm559, %v528, %v433
    %v562 = vsel %vm559, %v529, %v435
    %v563 = vsel %vm559, %v530, %v437
    %v564 = vsel %vm559, %v531, %v439
    %v565 = vsel %vm559, %v532, %v441
    %v566 = vsel %vm559, %v533, %v443
    %v567 = vsel %vm559, %v534, %v445
    %v568 = vsel %vm559, %v535, %v447
    %v569 = vsel %vm559, %v536, %v449
    %v570 = vsel %vm559, %v537, %v451
    %v571 = vsel %vm559, %v538, %v453
    %v572 = vsel %vm559, %v539, %v455
    %v573 = vsel %vm559, %v540, %v457
    %v574 = vsel %vm559, %v541, %v459
    %v575 = vsel %vm559, %v542, %v461
    %v576 = vsel %vm559, %v543, %v463
    %v577 = vsel %vm559, %v544, %v465
    %v578 = vsel %vm559, %v545, %v467
    %v579 = vsel %vm559, %v546, %v469
    %v580 = vsel %vm559, %v547, %v471
    %v581 = vsel %vm559, %v548, %v473
    %v582 = vsel %vm559, %v549, %v475
    %v583 = vsel %vm559, %v550, %v477
    %v584 = vsel %vm559, %v551, %v479
    %v585 = vsel %vm559, %v552, %v481
    %v586 = vsel %vm559, %v553, %v483
    %v587 = vsel %vm559, %v554, %v485
    %v588 = vsel %vm559, %v555, %v487
    %v589 = vsel %vm559, %v556, %v489
    %v590 = vsel %vm559, %v557, %v491
    %v591 = vsel %vm559, %v558, %v493
    %v592 = vpack.c.bf16 %v561, %v560
    %v593 = vpack.c.bf16 %v563, %v562
    %v594 = vpack.c.bf16 %v565, %v564
    %v595 = vpack.c.bf16 %v567, %v566
    %v596 = vpack.c.bf16 %v569, %v568
    %v597 = vpack.c.bf16 %v571, %v570
    %v598 = vpack.c.bf16 %v573, %v572
    %v599 = vpack.c.bf16 %v575, %v574
    %v600 = vpack.c.bf16 %v577, %v576
    %v601 = vpack.c.bf16 %v579, %v578
    %v602 = vpack.c.bf16 %v581, %v580
    %v603 = vpack.c.bf16 %v583, %v582
    %v604 = vpack.c.bf16 %v585, %v584
    %v605 = vpack.c.bf16 %v587, %v586
    %v606 = vpack.c.bf16 %v589, %v588
    %v607 = vpack.c.bf16 %v591, %v590
    %v608 = vld [vmem:[%s1] sm:$0xf]
    %v609 = vld [vmem:[%s1 + $0x4] sm:$0x3]
    %v610 = vld [vmem:[%s2] sm:$0x1]
    %v612 = vlaneseq
    %v613 = vshrl.u32 %v612, 7
    %v614 = vsub.s32 0, %v613
    %v615 = vrot.slane %v610, %v614
    %v619 = vunpack.c.l.b16 %v608
    %v620 = vunpack.c.l.b16 %v609
    %v621 = vpack.c.b16 %v620, %v619
    %vm622 = vcmask 97280
    %v624 = vsel %vm622, %v592, 0
    %v627 = vsel %vm622, %v593, 0
    %v630 = vsel %vm622, %v594, 0
    %v633 = vsel %vm622, %v595, 0
    %v636 = vsel %vm622, %v596, 0
    %v639 = vsel %vm622, %v597, 0
    %v642 = vsel %vm622, %v598, 0
    %v645 = vsel %vm622, %v599, 0
    %v648 = vsel %vm622, %v600, 0
    %v651 = vsel %vm622, %v601, 0
    %v654 = vsel %vm622, %v602, 0
    %v657 = vsel %vm622, %v603, 0
    %v660 = vsel %vm622, %v604, 0
    %v663 = vsel %vm622, %v605, 0
    %v666 = vsel %vm622, %v606, 0
    %v669 = vsel %vm622, %v607, 0
    %v672 = vsel %vm349, %v621, 0
    %674 = vmatprep.subr.bf16.mxu0 0
    %675 = vmatpush1.bf16.msra.mxu0 %v672
    %676 = vmatprep.subr.bf16.mxu0 0
    %677 = vmatpush1.bf16.msra.mxu0 0
    %678 = vmatprep.subr.bf16.mxu0 0
    %679 = vmatpush1.bf16.msra.mxu0 0
    %680 = vmatprep.subr.bf16.mxu0 0
    %681 = vmatpush1.bf16.msra.mxu0 0
    %682 = vmatprep.subr.bf16.mxu0 0
    %683 = vmatpush1.bf16.msra.mxu0 0
    %684 = vmatprep.subr.bf16.mxu0 0
    %685 = vmatpush1.bf16.msra.mxu0 0
    %686 = vmatprep.subr.bf16.mxu0 0
    %687 = vmatpush1.bf16.msra.mxu0 0
    %688 = vmatprep.subr.bf16.mxu0 0
    %689 = vmatpush1.bf16.msra.mxu0 0
    %690 = vmatprep.subr.bf16.mxu0 0
    %691 = vmatpush1.bf16.msra.mxu0 0
    %692 = vmatprep.subr.bf16.mxu0 0
    %693 = vmatpush1.bf16.msra.mxu0 0
    %694 = vmatprep.subr.bf16.mxu0 0
    %695 = vmatpush1.bf16.msra.mxu0 0
    %696 = vmatprep.subr.bf16.mxu0 0
    %697 = vmatpush1.bf16.msra.mxu0 0
    %698 = vmatprep.subr.bf16.mxu0 0
    %699 = vmatpush1.bf16.msra.mxu0 0
    %700 = vmatprep.subr.bf16.mxu0 0
    %701 = vmatpush1.bf16.msra.mxu0 0
    %702 = vmatprep.subr.bf16.mxu0 0
    %703 = vmatpush1.bf16.msra.mxu0 0
    %704 = vmatprep.subr.bf16.mxu0 0
    %705 = vmatpush1.bf16.msra.mxu0 0
    %706 = vmatprep.mubr.bf16.mxu0 0
    %707 = vmatmul.mubr.bf16.gmra.mrb[0].mxu0 %v624
    %v708 = vpop.f32.mrb[0].mxu0
    %v709 = vadd.f32 %v615, %v708
    %v710 = vpop.f32.mrb[0].mxu0
    %v711 = vpop.f32.mrb[0].mxu0
    %v712 = vadd.f32 %v615, %v711
    %v713 = vpop.f32.mrb[0].mxu0
    %714 = vmatprep.mubr.bf16.mxu0 0
    %715 = vmatmul.mubr.bf16.gmra.mrb[0].mxu0 %v627
    %v716 = vpop.f32.mrb[0].mxu0
    %v717 = vadd.f32 %v615, %v716
    %v718 = vpop.f32.mrb[0].mxu0
    %v719 = vpop.f32.mrb[0].mxu0
    %v720 = vadd.f32 %v615, %v719
    %v721 = vpop.f32.mrb[0].mxu0
    %722 = vmatprep.mubr.bf16.mxu0 0
    %723 = vmatmul.mubr.bf16.gmra.mrb[0].mxu0 %v630
    %v724 = vpop.f32.mrb[0].mxu0
    %v725 = vadd.f32 %v615, %v724
    %v726 = vpop.f32.mrb[0].mxu0
    %v727 = vpop.f32.mrb[0].mxu0
    %v728 = vadd.f32 %v615, %v727
    %v729 = vpop.f32.mrb[0].mxu0
    %730 = vmatprep.mubr.bf16.mxu0 0
    %731 = vmatmul.mubr.bf16.gmra.mrb[0].mxu0 %v633
    %v732 = vpop.f32.mrb[0].mxu0
    %v733 = vadd.f32 %v615, %v732
    %v734 = vpop.f32.mrb[0].mxu0
    %v735 = vpop.f32.mrb[0].mxu0
    %v736 = vadd.f32 %v615, %v735
    %v737 = vpop.f32.mrb[0].mxu0
    %738 = vmatprep.mubr.bf16.mxu0 0
    %739 = vmatmul.mubr.bf16.gmra.mrb[0].mxu0 %v636
    %v740 = vpop.f32.mrb[0].mxu0
    %v741 = vadd.f32 %v615, %v740
    %v742 = vpop.f32.mrb[0].mxu0
    %v743 = vpop.f32.mrb[0].mxu0
    %v744 = vadd.f32 %v615, %v743
    %v745 = vpop.f32.mrb[0].mxu0
    %746 = vmatprep.mubr.bf16.mxu0 0
    %747 = vmatmul.mubr.bf16.gmra.mrb[0].mxu0 %v639
    %v748 = vpop.f32.mrb[0].mxu0
    %v749 = vadd.f32 %v615, %v748
    %v750 = vpop.f32.mrb[0].mxu0
    %v751 = vpop.f32.mrb[0].mxu0
    %v752 = vadd.f32 %v615, %v751
    %v753 = vpop.f32.mrb[0].mxu0
    %754 = vmatprep.mubr.bf16.mxu0 0
    %755 = vmatmul.mubr.bf16.gmra.mrb[0].mxu0 %v642
    %v756 = vpop.f32.mrb[0].mxu0
    %v757 = vadd.f32 %v615, %v756
    %v758 = vpop.f32.mrb[0].mxu0
    %v759 = vpop.f32.mrb[0].mxu0
    %v760 = vadd.f32 %v615, %v759
    %v761 = vpop.f32.mrb[0].mxu0
    %762 = vmatprep.mubr.bf16.mxu0 0
    %763 = vmatmul.mubr.bf16.gmra.mrb[0].mxu0 %v645
    %v764 = vpop.f32.mrb[0].mxu0
    %v765 = vadd.f32 %v615, %v764
    %v766 = vpop.f32.mrb[0].mxu0
    %v767 = vpop.f32.mrb[0].mxu0
    %v768 = vadd.f32 %v615, %v767
    %v769 = vpop.f32.mrb[0].mxu0
    %770 = vmatprep.mubr.bf16.mxu0 0
    %771 = vmatmul.mubr.bf16.gmra.mrb[0].mxu0 %v648
    %v772 = vpop.f32.mrb[0].mxu0
    %v773 = vadd.f32 %v615, %v772
    %v774 = vpop.f32.mrb[0].mxu0
    %v775 = vpop.f32.mrb[0].mxu0
    %v776 = vadd.f32 %v615, %v775
    %v777 = vpop.f32.mrb[0].mxu0
    %778 = vmatprep.mubr.bf16.mxu0 0
    %779 = vmatmul.mubr.bf16.gmra.mrb[0].mxu0 %v651
    %v780 = vpop.f32.mrb[0].mxu0
    %v781 = vadd.f32 %v615, %v780
    %v782 = vpop.f32.mrb[0].mxu0
    %v783 = vpop.f32.mrb[0].mxu0
    %v784 = vadd.f32 %v615, %v783
    %v785 = vpop.f32.mrb[0].mxu0
    %786 = vmatprep.mubr.bf16.mxu0 0
    %787 = vmatmul.mubr.bf16.gmra.mrb[0].mxu0 %v654
    %v788 = vpop.f32.mrb[0].mxu0
    %v789 = vadd.f32 %v615, %v788
    %v790 = vpop.f32.mrb[0].mxu0
    %v791 = vpop.f32.mrb[0].mxu0
    %v792 = vadd.f32 %v615, %v791
    %v793 = vpop.f32.mrb[0].mxu0
    %794 = vmatprep.mubr.bf16.mxu0 0
    %795 = vmatmul.mubr.bf16.gmra.mrb[0].mxu0 %v657
    %v796 = vpop.f32.mrb[0].mxu0
    %v797 = vadd.f32 %v615, %v796
    %v798 = vpop.f32.mrb[0].mxu0
    %v799 = vpop.f32.mrb[0].mxu0
    %v800 = vadd.f32 %v615, %v799
    %v801 = vpop.f32.mrb[0].mxu0
    %802 = vmatprep.mubr.bf16.mxu0 0
    %803 = vmatmul.mubr.bf16.gmra.mrb[0].mxu0 %v660
    %v804 = vpop.f32.mrb[0].mxu0
    %v805 = vadd.f32 %v615, %v804
    %v806 = vpop.f32.mrb[0].mxu0
    %v807 = vpop.f32.mrb[0].mxu0
    %v808 = vadd.f32 %v615, %v807
    %v809 = vpop.f32.mrb[0].mxu0
    %810 = vmatprep.mubr.bf16.mxu0 0
    %811 = vmatmul.mubr.bf16.gmra.mrb[0].mxu0 %v663
    %v812 = vpop.f32.mrb[0].mxu0
    %v813 = vadd.f32 %v615, %v812
    %v814 = vpop.f32.mrb[0].mxu0
    %v815 = vpop.f32.mrb[0].mxu0
    %v816 = vadd.f32 %v615, %v815
    %v817 = vpop.f32.mrb[0].mxu0
    %818 = vmatprep.mubr.bf16.mxu0 0
    %819 = vmatmul.mubr.bf16.gmra.mrb[0].mxu0 %v666
    %v820 = vpop.f32.mrb[0].mxu0
    %v821 = vadd.f32 %v615, %v820
    %v822 = vpop.f32.mrb[0].mxu0
    %v823 = vpop.f32.mrb[0].mxu0
    %v824 = vadd.f32 %v615, %v823
    %v825 = vpop.f32.mrb[0].mxu0
    %826 = vmatprep.mubr.bf16.mxu0 0
    %827 = vmatmul.mubr.bf16.gmra.mrb[0].mxu0 %v669
    %v828 = vpop.f32.mrb[0].mxu0
    %v829 = vadd.f32 %v615, %v828
    %v830 = vpop.f32.mrb[0].mxu0
    %v831 = vpop.f32.mrb[0].mxu0
    %v832 = vadd.f32 %v615, %v831
    %v833 = vpop.f32.mrb[0].mxu0
    %834 = vdwg.mxu0
    %v835 = vtanh.pop %v709
    %v836 = vtanh.pop %v712
    %v837 = vtanh.pop %v717
    %v838 = vtanh.pop %v720
    %v839 = vtanh.pop %v725
    %v840 = vtanh.pop %v728
    %v841 = vtanh.pop %v733
    %v842 = vtanh.pop %v736
    %v843 = vtanh.pop %v741
    %v844 = vtanh.pop %v744
    %v845 = vtanh.pop %v749
    %v846 = vtanh.pop %v752
    %v847 = vtanh.pop %v757
    %v848 = vtanh.pop %v760
    %v849 = vtanh.pop %v765
    %v850 = vtanh.pop %v768
    %v851 = vtanh.pop %v773
    %v852 = vtanh.pop %v776
    %v853 = vtanh.pop %v781
    %v854 = vtanh.pop %v784
    %v855 = vtanh.pop %v789
    %v856 = vtanh.pop %v792
    %v857 = vtanh.pop %v797
    %v858 = vtanh.pop %v800
    %v859 = vtanh.pop %v805
    %v860 = vtanh.pop %v808
    %v861 = vtanh.pop %v813
    %v862 = vtanh.pop %v816
    %v863 = vtanh.pop %v821
    %v864 = vtanh.pop %v824
    %v865 = vtanh.pop %v829
    %v866 = vtanh.pop %v832
    %v867 = vld [vmem:[%s3] sm:$0x1]
    %v869 = vlaneseq
    %v870 = vshrl.u32 %v869, 7
    %v871 = vsub.s32 0, %v870
    %v872 = vrot.slane %v867, %v871
    %873 = vrot.lane.b32.xlu0 %v872, 32
    %v874 = vpop.permute.xlu0 %873
    %v876 = vmul.f32 %v835, %v874
    %v877 = vmul.f32 %v836, %v874
    %v878 = vmul.f32 %v837, %v874
    %v879 = vmul.f32 %v838, %v874
    %v880 = vmul.f32 %v839, %v874
    %v881 = vmul.f32 %v840, %v874
    %v882 = vmul.f32 %v841, %v874
    %v883 = vmul.f32 %v842, %v874
    %v884 = vmul.f32 %v843, %v874
    %v885 = vmul.f32 %v844, %v874
    %v886 = vmul.f32 %v845, %v874
    %v887 = vmul.f32 %v846, %v874
    %v888 = vmul.f32 %v847, %v874
    %v889 = vmul.f32 %v848, %v874
    %v890 = vmul.f32 %v849, %v874
    %v891 = vmul.f32 %v850, %v874
    %v892 = vmul.f32 %v851, %v874
    %v893 = vmul.f32 %v852, %v874
    %v894 = vmul.f32 %v853, %v874
    %v895 = vmul.f32 %v854, %v874
    %v896 = vmul.f32 %v855, %v874
    %v897 = vmul.f32 %v856, %v874
    %v898 = vmul.f32 %v857, %v874
    %v899 = vmul.f32 %v858, %v874
    %v900 = vmul.f32 %v859, %v874
    %v901 = vmul.f32 %v860, %v874
    %v902 = vmul.f32 %v861, %v874
    %v903 = vmul.f32 %v862, %v874
    %v904 = vmul.f32 %v863, %v874
    %v905 = vmul.f32 %v864, %v874
    %v906 = vmul.f32 %v865, %v874
    %v907 = vmul.f32 %v866, %v874
    %940 = vrot.lane.b32.xlu0 %v876, 96
    %v941 = vpop.permute.xlu0 %940
    %942 = vrot.lane.b32.xlu0 %v877, 96
    %v943 = vpop.permute.xlu0 %942
    %944 = vrot.lane.b32.xlu0 %v878, 96
    %v945 = vpop.permute.xlu0 %944
    %946 = vrot.lane.b32.xlu0 %v879, 96
    %v947 = vpop.permute.xlu0 %946
    %948 = vrot.lane.b32.xlu0 %v880, 96
    %v949 = vpop.permute.xlu0 %948
    %950 = vrot.lane.b32.xlu0 %v881, 96
    %v951 = vpop.permute.xlu0 %950
    %952 = vrot.lane.b32.xlu0 %v882, 96
    %v953 = vpop.permute.xlu0 %952
    %954 = vrot.lane.b32.xlu0 %v883, 96
    %v955 = vpop.permute.xlu0 %954
    %956 = vrot.lane.b32.xlu0 %v884, 96
    %v957 = vpop.permute.xlu0 %956
    %958 = vrot.lane.b32.xlu0 %v885, 96
    %v959 = vpop.permute.xlu0 %958
    %960 = vrot.lane.b32.xlu0 %v886, 96
    %v961 = vpop.permute.xlu0 %960
    %962 = vrot.lane.b32.xlu0 %v887, 96
    %v963 = vpop.permute.xlu0 %962
    %964 = vrot.lane.b32.xlu0 %v888, 96
    %v965 = vpop.permute.xlu0 %964
    %966 = vrot.lane.b32.xlu0 %v889, 96
    %v967 = vpop.permute.xlu0 %966
    %968 = vrot.lane.b32.xlu0 %v890, 96
    %v969 = vpop.permute.xlu0 %968
    %970 = vrot.lane.b32.xlu0 %v891, 96
    %v971 = vpop.permute.xlu0 %970
    %972 = vrot.lane.b32.xlu0 %v892, 96
    %v973 = vpop.permute.xlu0 %972
    %974 = vrot.lane.b32.xlu0 %v893, 96
    %v975 = vpop.permute.xlu0 %974
    %976 = vrot.lane.b32.xlu0 %v894, 96
    %v977 = vpop.permute.xlu0 %976
    %978 = vrot.lane.b32.xlu0 %v895, 96
    %v979 = vpop.permute.xlu0 %978
    %980 = vrot.lane.b32.xlu0 %v896, 96
    %v981 = vpop.permute.xlu0 %980
    %982 = vrot.lane.b32.xlu0 %v897, 96
    %v983 = vpop.permute.xlu0 %982
    %984 = vrot.lane.b32.xlu0 %v898, 96
    %v985 = vpop.permute.xlu0 %984
    %986 = vrot.lane.b32.xlu0 %v899, 96
    %v987 = vpop.permute.xlu0 %986
    %988 = vrot.lane.b32.xlu0 %v900, 96
    %v989 = vpop.permute.xlu0 %988
    %990 = vrot.lane.b32.xlu0 %v901, 96
    %v991 = vpop.permute.xlu0 %990
    %992 = vrot.lane.b32.xlu0 %v902, 96
    %v993 = vpop.permute.xlu0 %992
    %994 = vrot.lane.b32.xlu0 %v903, 96
    %v995 = vpop.permute.xlu0 %994
    %996 = vrot.lane.b32.xlu0 %v904, 96
    %v997 = vpop.permute.xlu0 %996
    %998 = vrot.lane.b32.xlu0 %v905, 96
    %v999 = vpop.permute.xlu0 %998
    %1000 = vrot.lane.b32.xlu0 %v906, 96
    %v1001 = vpop.permute.xlu0 %1000
    %1002 = vrot.lane.b32.xlu0 %v907, 96
    %v1003 = vpop.permute.xlu0 %1002
    %vm1036 = vcmask 261120
    %v1037 = vsel %vm1036, %v941, 0.0
    %1038 = vadd.xlane.f32.xlu0 %v1037
    %v1039 = vpop.xlane.xlu0 %1038
    %v1040 = vsel %vm1036, %v943, 0.0
    %1041 = vadd.xlane.f32.xlu0 %v1040
    %v1042 = vpop.xlane.xlu0 %1041
    %v1043 = vsel %vm1036, %v945, 0.0
    %1044 = vadd.xlane.f32.xlu0 %v1043
    %v1045 = vpop.xlane.xlu0 %1044
    %v1046 = vsel %vm1036, %v947, 0.0
    %1047 = vadd.xlane.f32.xlu0 %v1046
    %v1048 = vpop.xlane.xlu0 %1047
    %v1049 = vsel %vm1036, %v949, 0.0
    %1050 = vadd.xlane.f32.xlu0 %v1049
    %v1051 = vpop.xlane.xlu0 %1050
    %v1052 = vsel %vm1036, %v951, 0.0
    %1053 = vadd.xlane.f32.xlu0 %v1052
    %v1054 = vpop.xlane.xlu0 %1053
    %v1055 = vsel %vm1036, %v953, 0.0
    %1056 = vadd.xlane.f32.xlu0 %v1055
    %v1057 = vpop.xlane.xlu0 %1056
    %v1058 = vsel %vm1036, %v955, 0.0
    %1059 = vadd.xlane.f32.xlu0 %v1058
    %v1060 = vpop.xlane.xlu0 %1059
    %v1061 = vsel %vm1036, %v957, 0.0
    %1062 = vadd.xlane.f32.xlu0 %v1061
    %v1063 = vpop.xlane.xlu0 %1062
    %v1064 = vsel %vm1036, %v959, 0.0
    %1065 = vadd.xlane.f32.xlu0 %v1064
    %v1066 = vpop.xlane.xlu0 %1065
    %v1067 = vsel %vm1036, %v961, 0.0
    %1068 = vadd.xlane.f32.xlu0 %v1067
    %v1069 = vpop.xlane.xlu0 %1068
    %v1070 = vsel %vm1036, %v963, 0.0
    %1071 = vadd.xlane.f32.xlu0 %v1070
    %v1072 = vpop.xlane.xlu0 %1071
    %v1073 = vsel %vm1036, %v965, 0.0
    %1074 = vadd.xlane.f32.xlu0 %v1073
    %v1075 = vpop.xlane.xlu0 %1074
    %v1076 = vsel %vm1036, %v967, 0.0
    %1077 = vadd.xlane.f32.xlu0 %v1076
    %v1078 = vpop.xlane.xlu0 %1077
    %v1079 = vsel %vm1036, %v969, 0.0
    %1080 = vadd.xlane.f32.xlu0 %v1079
    %v1081 = vpop.xlane.xlu0 %1080
    %v1082 = vsel %vm1036, %v971, 0.0
    %1083 = vadd.xlane.f32.xlu0 %v1082
    %v1084 = vpop.xlane.xlu0 %1083
    %v1085 = vsel %vm1036, %v973, 0.0
    %1086 = vadd.xlane.f32.xlu0 %v1085
    %v1087 = vpop.xlane.xlu0 %1086
    %v1088 = vsel %vm1036, %v975, 0.0
    %1089 = vadd.xlane.f32.xlu0 %v1088
    %v1090 = vpop.xlane.xlu0 %1089
    %v1091 = vsel %vm1036, %v977, 0.0
    %1092 = vadd.xlane.f32.xlu0 %v1091
    %v1093 = vpop.xlane.xlu0 %1092
    %v1094 = vsel %vm1036, %v979, 0.0
    %1095 = vadd.xlane.f32.xlu0 %v1094
    %v1096 = vpop.xlane.xlu0 %1095
    %v1097 = vsel %vm1036, %v981, 0.0
    %1098 = vadd.xlane.f32.xlu0 %v1097
    %v1099 = vpop.xlane.xlu0 %1098
    %v1100 = vsel %vm1036, %v983, 0.0
    %1101 = vadd.xlane.f32.xlu0 %v1100
    %v1102 = vpop.xlane.xlu0 %1101
    %v1103 = vsel %vm1036, %v985, 0.0
    %1104 = vadd.xlane.f32.xlu0 %v1103
    %v1105 = vpop.xlane.xlu0 %1104
    %v1106 = vsel %vm1036, %v987, 0.0
    %1107 = vadd.xlane.f32.xlu0 %v1106
    %v1108 = vpop.xlane.xlu0 %1107
    %v1109 = vsel %vm1036, %v989, 0.0
    %1110 = vadd.xlane.f32.xlu0 %v1109
    %v1111 = vpop.xlane.xlu0 %1110
    %v1112 = vsel %vm1036, %v991, 0.0
    %1113 = vadd.xlane.f32.xlu0 %v1112
    %v1114 = vpop.xlane.xlu0 %1113
    %v1115 = vsel %vm1036, %v993, 0.0
    %1116 = vadd.xlane.f32.xlu0 %v1115
    %v1117 = vpop.xlane.xlu0 %1116
    %v1118 = vsel %vm1036, %v995, 0.0
    %1119 = vadd.xlane.f32.xlu0 %v1118
    %v1120 = vpop.xlane.xlu0 %1119
    %v1121 = vsel %vm1036, %v997, 0.0
    %1122 = vadd.xlane.f32.xlu0 %v1121
    %v1123 = vpop.xlane.xlu0 %1122
    %v1124 = vsel %vm1036, %v999, 0.0
    %1125 = vadd.xlane.f32.xlu0 %v1124
    %v1126 = vpop.xlane.xlu0 %1125
    %v1127 = vsel %vm1036, %v1001, 0.0
    %1128 = vadd.xlane.f32.xlu0 %v1127
    %v1129 = vpop.xlane.xlu0 %1128
    %v1130 = vsel %vm1036, %v1003, 0.0
    %1131 = vadd.xlane.f32.xlu0 %v1130
    %v1132 = vpop.xlane.xlu0 %1131
    %v1133 = vld [vmem:[%s4] sm:$0xff]
    %v1134 = vld [vmem:[%s4 + $0x8] sm:$0xff]
    %v1135 = vadd.f32 %v1039, %v1133
    %v1136 = vadd.f32 %v1042, %v1134
    %v1137 = vadd.f32 %v1045, %v1133
    %v1138 = vadd.f32 %v1048, %v1134
    %v1139 = vadd.f32 %v1051, %v1133
    %v1140 = vadd.f32 %v1054, %v1134
    %v1141 = vadd.f32 %v1057, %v1133
    %v1142 = vadd.f32 %v1060, %v1134
    %v1143 = vadd.f32 %v1063, %v1133
    %v1144 = vadd.f32 %v1066, %v1134
    %v1145 = vadd.f32 %v1069, %v1133
    %v1146 = vadd.f32 %v1072, %v1134
    %v1147 = vadd.f32 %v1075, %v1133
    %v1148 = vadd.f32 %v1078, %v1134
    %v1149 = vadd.f32 %v1081, %v1133
    %v1150 = vadd.f32 %v1084, %v1134
    %v1151 = vadd.f32 %v1087, %v1133
    %v1152 = vadd.f32 %v1090, %v1134
    %v1153 = vadd.f32 %v1093, %v1133
    %v1154 = vadd.f32 %v1096, %v1134
    %v1155 = vadd.f32 %v1099, %v1133
    %v1156 = vadd.f32 %v1102, %v1134
    %v1157 = vadd.f32 %v1105, %v1133
    %v1158 = vadd.f32 %v1108, %v1134
    %v1159 = vadd.f32 %v1111, %v1133
    %v1160 = vadd.f32 %v1114, %v1134
    %v1161 = vadd.f32 %v1117, %v1133
    %v1162 = vadd.f32 %v1120, %v1134
    %v1163 = vadd.f32 %v1123, %v1133
    %v1164 = vadd.f32 %v1126, %v1134
    %v1165 = vadd.f32 %v1129, %v1133
    %v1166 = vadd.f32 %v1132, %v1134
    %vm1167 = vcmask 7168
    %v1168 = vsel %vm1167, %v1135, -inf
    %v1169 = vsel %vm1167, %v1136, -inf
    %v1170 = vmax.f32 %v1168, %v1169
    %v1171 = vrot.slane %v1170, 4
    %v1172 = vmax.f32 %v1170, %v1171
    %v1173 = vrot.slane %v1172, 2
    %v1174 = vmax.f32 %v1172, %v1173
    %v1175 = vrot.slane %v1174, 1
    %v1176 = vmax.f32 %v1174, %v1175
    %v1177 = vsel %vm1167, %v1137, -inf
    %v1178 = vsel %vm1167, %v1138, -inf
    %v1179 = vmax.f32 %v1177, %v1178
    %v1180 = vrot.slane %v1179, 4
    %v1181 = vmax.f32 %v1179, %v1180
    %v1182 = vrot.slane %v1181, 2
    %v1183 = vmax.f32 %v1181, %v1182
    %v1184 = vrot.slane %v1183, 1
    %v1185 = vmax.f32 %v1183, %v1184
    %v1186 = vsel %vm1167, %v1139, -inf
    %v1187 = vsel %vm1167, %v1140, -inf
    %v1188 = vmax.f32 %v1186, %v1187
    %v1189 = vrot.slane %v1188, 4
    %v1190 = vmax.f32 %v1188, %v1189
    %v1191 = vrot.slane %v1190, 2
    %v1192 = vmax.f32 %v1190, %v1191
    %v1193 = vrot.slane %v1192, 1
    %v1194 = vmax.f32 %v1192, %v1193
    %v1195 = vsel %vm1167, %v1141, -inf
    %v1196 = vsel %vm1167, %v1142, -inf
    %v1197 = vmax.f32 %v1195, %v1196
    %v1198 = vrot.slane %v1197, 4
    %v1199 = vmax.f32 %v1197, %v1198
    %v1200 = vrot.slane %v1199, 2
    %v1201 = vmax.f32 %v1199, %v1200
    %v1202 = vrot.slane %v1201, 1
    %v1203 = vmax.f32 %v1201, %v1202
    %v1204 = vsel %vm1167, %v1143, -inf
    %v1205 = vsel %vm1167, %v1144, -inf
    %v1206 = vmax.f32 %v1204, %v1205
    %v1207 = vrot.slane %v1206, 4
    %v1208 = vmax.f32 %v1206, %v1207
    %v1209 = vrot.slane %v1208, 2
    %v1210 = vmax.f32 %v1208, %v1209
    %v1211 = vrot.slane %v1210, 1
    %v1212 = vmax.f32 %v1210, %v1211
    %v1213 = vsel %vm1167, %v1145, -inf
    %v1214 = vsel %vm1167, %v1146, -inf
    %v1215 = vmax.f32 %v1213, %v1214
    %v1216 = vrot.slane %v1215, 4
    %v1217 = vmax.f32 %v1215, %v1216
    %v1218 = vrot.slane %v1217, 2
    %v1219 = vmax.f32 %v1217, %v1218
    %v1220 = vrot.slane %v1219, 1
    %v1221 = vmax.f32 %v1219, %v1220
    %v1222 = vsel %vm1167, %v1147, -inf
    %v1223 = vsel %vm1167, %v1148, -inf
    %v1224 = vmax.f32 %v1222, %v1223
    %v1225 = vrot.slane %v1224, 4
    %v1226 = vmax.f32 %v1224, %v1225
    %v1227 = vrot.slane %v1226, 2
    %v1228 = vmax.f32 %v1226, %v1227
    %v1229 = vrot.slane %v1228, 1
    %v1230 = vmax.f32 %v1228, %v1229
    %v1231 = vsel %vm1167, %v1149, -inf
    %v1232 = vsel %vm1167, %v1150, -inf
    %v1233 = vmax.f32 %v1231, %v1232
    %v1234 = vrot.slane %v1233, 4
    %v1235 = vmax.f32 %v1233, %v1234
    %v1236 = vrot.slane %v1235, 2
    %v1237 = vmax.f32 %v1235, %v1236
    %v1238 = vrot.slane %v1237, 1
    %v1239 = vmax.f32 %v1237, %v1238
    %v1240 = vsel %vm1167, %v1151, -inf
    %v1241 = vsel %vm1167, %v1152, -inf
    %v1242 = vmax.f32 %v1240, %v1241
    %v1243 = vrot.slane %v1242, 4
    %v1244 = vmax.f32 %v1242, %v1243
    %v1245 = vrot.slane %v1244, 2
    %v1246 = vmax.f32 %v1244, %v1245
    %v1247 = vrot.slane %v1246, 1
    %v1248 = vmax.f32 %v1246, %v1247
    %v1249 = vsel %vm1167, %v1153, -inf
    %v1250 = vsel %vm1167, %v1154, -inf
    %v1251 = vmax.f32 %v1249, %v1250
    %v1252 = vrot.slane %v1251, 4
    %v1253 = vmax.f32 %v1251, %v1252
    %v1254 = vrot.slane %v1253, 2
    %v1255 = vmax.f32 %v1253, %v1254
    %v1256 = vrot.slane %v1255, 1
    %v1257 = vmax.f32 %v1255, %v1256
    %v1258 = vsel %vm1167, %v1155, -inf
    %v1259 = vsel %vm1167, %v1156, -inf
    %v1260 = vmax.f32 %v1258, %v1259
    %v1261 = vrot.slane %v1260, 4
    %v1262 = vmax.f32 %v1260, %v1261
    %v1263 = vrot.slane %v1262, 2
    %v1264 = vmax.f32 %v1262, %v1263
    %v1265 = vrot.slane %v1264, 1
    %v1266 = vmax.f32 %v1264, %v1265
    %v1267 = vsel %vm1167, %v1157, -inf
    %v1268 = vsel %vm1167, %v1158, -inf
    %v1269 = vmax.f32 %v1267, %v1268
    %v1270 = vrot.slane %v1269, 4
    %v1271 = vmax.f32 %v1269, %v1270
    %v1272 = vrot.slane %v1271, 2
    %v1273 = vmax.f32 %v1271, %v1272
    %v1274 = vrot.slane %v1273, 1
    %v1275 = vmax.f32 %v1273, %v1274
    %v1276 = vsel %vm1167, %v1159, -inf
    %v1277 = vsel %vm1167, %v1160, -inf
    %v1278 = vmax.f32 %v1276, %v1277
    %v1279 = vrot.slane %v1278, 4
    %v1280 = vmax.f32 %v1278, %v1279
    %v1281 = vrot.slane %v1280, 2
    %v1282 = vmax.f32 %v1280, %v1281
    %v1283 = vrot.slane %v1282, 1
    %v1284 = vmax.f32 %v1282, %v1283
    %v1285 = vsel %vm1167, %v1161, -inf
    %v1286 = vsel %vm1167, %v1162, -inf
    %v1287 = vmax.f32 %v1285, %v1286
    %v1288 = vrot.slane %v1287, 4
    %v1289 = vmax.f32 %v1287, %v1288
    %v1290 = vrot.slane %v1289, 2
    %v1291 = vmax.f32 %v1289, %v1290
    %v1292 = vrot.slane %v1291, 1
    %v1293 = vmax.f32 %v1291, %v1292
    %v1294 = vsel %vm1167, %v1163, -inf
    %v1295 = vsel %vm1167, %v1164, -inf
    %v1296 = vmax.f32 %v1294, %v1295
    %v1297 = vrot.slane %v1296, 4
    %v1298 = vmax.f32 %v1296, %v1297
    %v1299 = vrot.slane %v1298, 2
    %v1300 = vmax.f32 %v1298, %v1299
    %v1301 = vrot.slane %v1300, 1
    %v1302 = vmax.f32 %v1300, %v1301
    %v1303 = vsel %vm1167, %v1165, -inf
    %v1304 = vsel %vm1167, %v1166, -inf
    %v1305 = vmax.f32 %v1303, %v1304
    %v1306 = vrot.slane %v1305, 4
    %v1307 = vmax.f32 %v1305, %v1306
    %v1308 = vrot.slane %v1307, 2
    %v1309 = vmax.f32 %v1307, %v1308
    %v1310 = vrot.slane %v1309, 1
    %v1311 = vmax.f32 %v1309, %v1310
    %v1312 = vsub.f32 %v1135, %v1176
    %v1313 = vsub.f32 %v1136, %v1176
    %v1314 = vsub.f32 %v1137, %v1185
    %v1315 = vsub.f32 %v1138, %v1185
    %v1316 = vsub.f32 %v1139, %v1194
    %v1317 = vsub.f32 %v1140, %v1194
    %v1318 = vsub.f32 %v1141, %v1203
    %v1319 = vsub.f32 %v1142, %v1203
    %v1320 = vsub.f32 %v1143, %v1212
    %v1321 = vsub.f32 %v1144, %v1212
    %v1322 = vsub.f32 %v1145, %v1221
    %v1323 = vsub.f32 %v1146, %v1221
    %v1324 = vsub.f32 %v1147, %v1230
    %v1325 = vsub.f32 %v1148, %v1230
    %v1326 = vsub.f32 %v1149, %v1239
    %v1327 = vsub.f32 %v1150, %v1239
    %v1328 = vsub.f32 %v1151, %v1248
    %v1329 = vsub.f32 %v1152, %v1248
    %v1330 = vsub.f32 %v1153, %v1257
    %v1331 = vsub.f32 %v1154, %v1257
    %v1332 = vsub.f32 %v1155, %v1266
    %v1333 = vsub.f32 %v1156, %v1266
    %v1334 = vsub.f32 %v1157, %v1275
    %v1335 = vsub.f32 %v1158, %v1275
    %v1336 = vsub.f32 %v1159, %v1284
    %v1337 = vsub.f32 %v1160, %v1284
    %v1338 = vsub.f32 %v1161, %v1293
    %v1339 = vsub.f32 %v1162, %v1293
    %v1340 = vsub.f32 %v1163, %v1302
    %v1341 = vsub.f32 %v1164, %v1302
    %v1342 = vsub.f32 %v1165, %v1311
    %v1343 = vsub.f32 %v1166, %v1311
    %v1344 = vmul.f32 %v1312, 1.442695
    %v1345 = vpow.pop %v1344
    %v1346 = vmul.f32 %v1313, 1.442695
    %v1347 = vpow.pop %v1346
    %v1348 = vmul.f32 %v1314, 1.442695
    %v1349 = vpow.pop %v1348
    %v1350 = vmul.f32 %v1315, 1.442695
    %v1351 = vpow.pop %v1350
    %v1352 = vmul.f32 %v1316, 1.442695
    %v1353 = vpow.pop %v1352
    %v1354 = vmul.f32 %v1317, 1.442695
    %v1355 = vpow.pop %v1354
    %v1356 = vmul.f32 %v1318, 1.442695
    %v1357 = vpow.pop %v1356
    %v1358 = vmul.f32 %v1319, 1.442695
    %v1359 = vpow.pop %v1358
    %v1360 = vmul.f32 %v1320, 1.442695
    %v1361 = vpow.pop %v1360
    %v1362 = vmul.f32 %v1321, 1.442695
    %v1363 = vpow.pop %v1362
    %v1364 = vmul.f32 %v1322, 1.442695
    %v1365 = vpow.pop %v1364
    %v1366 = vmul.f32 %v1323, 1.442695
    %v1367 = vpow.pop %v1366
    %v1368 = vmul.f32 %v1324, 1.442695
    %v1369 = vpow.pop %v1368
    %v1370 = vmul.f32 %v1325, 1.442695
    %v1371 = vpow.pop %v1370
    %v1372 = vmul.f32 %v1326, 1.442695
    %v1373 = vpow.pop %v1372
    %v1374 = vmul.f32 %v1327, 1.442695
    %v1375 = vpow.pop %v1374
    %v1376 = vmul.f32 %v1328, 1.442695
    %v1377 = vpow.pop %v1376
    %v1378 = vmul.f32 %v1329, 1.442695
    %v1379 = vpow.pop %v1378
    %v1380 = vmul.f32 %v1330, 1.442695
    %v1381 = vpow.pop %v1380
    %v1382 = vmul.f32 %v1331, 1.442695
    %v1383 = vpow.pop %v1382
    %v1384 = vmul.f32 %v1332, 1.442695
    %v1385 = vpow.pop %v1384
    %v1386 = vmul.f32 %v1333, 1.442695
    %v1387 = vpow.pop %v1386
    %v1388 = vmul.f32 %v1334, 1.442695
    %v1389 = vpow.pop %v1388
    %v1390 = vmul.f32 %v1335, 1.442695
    %v1391 = vpow.pop %v1390
    %v1392 = vmul.f32 %v1336, 1.442695
    %v1393 = vpow.pop %v1392
    %v1394 = vmul.f32 %v1337, 1.442695
    %v1395 = vpow.pop %v1394
    %v1396 = vmul.f32 %v1338, 1.442695
    %v1397 = vpow.pop %v1396
    %v1398 = vmul.f32 %v1339, 1.442695
    %v1399 = vpow.pop %v1398
    %v1400 = vmul.f32 %v1340, 1.442695
    %v1401 = vpow.pop %v1400
    %v1402 = vmul.f32 %v1341, 1.442695
    %v1403 = vpow.pop %v1402
    %v1404 = vmul.f32 %v1342, 1.442695
    %v1405 = vpow.pop %v1404
    %v1406 = vmul.f32 %v1343, 1.442695
    %v1407 = vpow.pop %v1406
    %v1408 = vsel %vm1167, %v1345, 0.0
    %v1409 = vsel %vm1167, %v1347, 0.0
    %v1410 = vadd.f32 %v1408, %v1409
    %v1411 = vrot.slane %v1410, 4
    %v1412 = vadd.f32 %v1410, %v1411
    %v1413 = vrot.slane %v1412, 2
    %v1414 = vadd.f32 %v1412, %v1413
    %v1415 = vrot.slane %v1414, 1
    %v1416 = vadd.f32 %v1414, %v1415
    %v1417 = vsel %vm1167, %v1349, 0.0
    %v1418 = vsel %vm1167, %v1351, 0.0
    %v1419 = vadd.f32 %v1417, %v1418
    %v1420 = vrot.slane %v1419, 4
    %v1421 = vadd.f32 %v1419, %v1420
    %v1422 = vrot.slane %v1421, 2
    %v1423 = vadd.f32 %v1421, %v1422
    %v1424 = vrot.slane %v1423, 1
    %v1425 = vadd.f32 %v1423, %v1424
    %v1426 = vsel %vm1167, %v1353, 0.0
    %v1427 = vsel %vm1167, %v1355, 0.0
    %v1428 = vadd.f32 %v1426, %v1427
    %v1429 = vrot.slane %v1428, 4
    %v1430 = vadd.f32 %v1428, %v1429
    %v1431 = vrot.slane %v1430, 2
    %v1432 = vadd.f32 %v1430, %v1431
    %v1433 = vrot.slane %v1432, 1
    %v1434 = vadd.f32 %v1432, %v1433
    %v1435 = vsel %vm1167, %v1357, 0.0
    %v1436 = vsel %vm1167, %v1359, 0.0
    %v1437 = vadd.f32 %v1435, %v1436
    %v1438 = vrot.slane %v1437, 4
    %v1439 = vadd.f32 %v1437, %v1438
    %v1440 = vrot.slane %v1439, 2
    %v1441 = vadd.f32 %v1439, %v1440
    %v1442 = vrot.slane %v1441, 1
    %v1443 = vadd.f32 %v1441, %v1442
    %v1444 = vsel %vm1167, %v1361, 0.0
    %v1445 = vsel %vm1167, %v1363, 0.0
    %v1446 = vadd.f32 %v1444, %v1445
    %v1447 = vrot.slane %v1446, 4
    %v1448 = vadd.f32 %v1446, %v1447
    %v1449 = vrot.slane %v1448, 2
    %v1450 = vadd.f32 %v1448, %v1449
    %v1451 = vrot.slane %v1450, 1
    %v1452 = vadd.f32 %v1450, %v1451
    %v1453 = vsel %vm1167, %v1365, 0.0
    %v1454 = vsel %vm1167, %v1367, 0.0
    %v1455 = vadd.f32 %v1453, %v1454
    %v1456 = vrot.slane %v1455, 4
    %v1457 = vadd.f32 %v1455, %v1456
    %v1458 = vrot.slane %v1457, 2
    %v1459 = vadd.f32 %v1457, %v1458
    %v1460 = vrot.slane %v1459, 1
    %v1461 = vadd.f32 %v1459, %v1460
    %v1462 = vsel %vm1167, %v1369, 0.0
    %v1463 = vsel %vm1167, %v1371, 0.0
    %v1464 = vadd.f32 %v1462, %v1463
    %v1465 = vrot.slane %v1464, 4
    %v1466 = vadd.f32 %v1464, %v1465
    %v1467 = vrot.slane %v1466, 2
    %v1468 = vadd.f32 %v1466, %v1467
    %v1469 = vrot.slane %v1468, 1
    %v1470 = vadd.f32 %v1468, %v1469
    %v1471 = vsel %vm1167, %v1373, 0.0
    %v1472 = vsel %vm1167, %v1375, 0.0
    %v1473 = vadd.f32 %v1471, %v1472
    %v1474 = vrot.slane %v1473, 4
    %v1475 = vadd.f32 %v1473, %v1474
    %v1476 = vrot.slane %v1475, 2
    %v1477 = vadd.f32 %v1475, %v1476
    %v1478 = vrot.slane %v1477, 1
    %v1479 = vadd.f32 %v1477, %v1478
    %v1480 = vsel %vm1167, %v1377, 0.0
    %v1481 = vsel %vm1167, %v1379, 0.0
    %v1482 = vadd.f32 %v1480, %v1481
    %v1483 = vrot.slane %v1482, 4
    %v1484 = vadd.f32 %v1482, %v1483
    %v1485 = vrot.slane %v1484, 2
    %v1486 = vadd.f32 %v1484, %v1485
    %v1487 = vrot.slane %v1486, 1
    %v1488 = vadd.f32 %v1486, %v1487
    %v1489 = vsel %vm1167, %v1381, 0.0
    %v1490 = vsel %vm1167, %v1383, 0.0
    %v1491 = vadd.f32 %v1489, %v1490
    %v1492 = vrot.slane %v1491, 4
    %v1493 = vadd.f32 %v1491, %v1492
    %v1494 = vrot.slane %v1493, 2
    %v1495 = vadd.f32 %v1493, %v1494
    %v1496 = vrot.slane %v1495, 1
    %v1497 = vadd.f32 %v1495, %v1496
    %v1498 = vsel %vm1167, %v1385, 0.0
    %v1499 = vsel %vm1167, %v1387, 0.0
    %v1500 = vadd.f32 %v1498, %v1499
    %v1501 = vrot.slane %v1500, 4
    %v1502 = vadd.f32 %v1500, %v1501
    %v1503 = vrot.slane %v1502, 2
    %v1504 = vadd.f32 %v1502, %v1503
    %v1505 = vrot.slane %v1504, 1
    %v1506 = vadd.f32 %v1504, %v1505
    %v1507 = vsel %vm1167, %v1389, 0.0
    %v1508 = vsel %vm1167, %v1391, 0.0
    %v1509 = vadd.f32 %v1507, %v1508
    %v1510 = vrot.slane %v1509, 4
    %v1511 = vadd.f32 %v1509, %v1510
    %v1512 = vrot.slane %v1511, 2
    %v1513 = vadd.f32 %v1511, %v1512
    %v1514 = vrot.slane %v1513, 1
    %v1515 = vadd.f32 %v1513, %v1514
    %v1516 = vsel %vm1167, %v1393, 0.0
    %v1517 = vsel %vm1167, %v1395, 0.0
    %v1518 = vadd.f32 %v1516, %v1517
    %v1519 = vrot.slane %v1518, 4
    %v1520 = vadd.f32 %v1518, %v1519
    %v1521 = vrot.slane %v1520, 2
    %v1522 = vadd.f32 %v1520, %v1521
    %v1523 = vrot.slane %v1522, 1
    %v1524 = vadd.f32 %v1522, %v1523
    %v1525 = vsel %vm1167, %v1397, 0.0
    %v1526 = vsel %vm1167, %v1399, 0.0
    %v1527 = vadd.f32 %v1525, %v1526
    %v1528 = vrot.slane %v1527, 4
    %v1529 = vadd.f32 %v1527, %v1528
    %v1530 = vrot.slane %v1529, 2
    %v1531 = vadd.f32 %v1529, %v1530
    %v1532 = vrot.slane %v1531, 1
    %v1533 = vadd.f32 %v1531, %v1532
    %v1534 = vsel %vm1167, %v1401, 0.0
    %v1535 = vsel %vm1167, %v1403, 0.0
    %v1536 = vadd.f32 %v1534, %v1535
    %v1537 = vrot.slane %v1536, 4
    %v1538 = vadd.f32 %v1536, %v1537
    %v1539 = vrot.slane %v1538, 2
    %v1540 = vadd.f32 %v1538, %v1539
    %v1541 = vrot.slane %v1540, 1
    %v1542 = vadd.f32 %v1540, %v1541
    %v1543 = vsel %vm1167, %v1405, 0.0
    %v1544 = vsel %vm1167, %v1407, 0.0
    %v1545 = vadd.f32 %v1543, %v1544
    %v1546 = vrot.slane %v1545, 4
    %v1547 = vadd.f32 %v1545, %v1546
    %v1548 = vrot.slane %v1547, 2
    %v1549 = vadd.f32 %v1547, %v1548
    %v1550 = vrot.slane %v1549, 1
    %v1551 = vadd.f32 %v1549, %v1550
    %v1552 = vrcp.pop %v1416
    %v1553 = vrcp.pop %v1425
    %v1554 = vrcp.pop %v1434
    %v1555 = vrcp.pop %v1443
    %v1556 = vrcp.pop %v1452
    %v1557 = vrcp.pop %v1461
    %v1558 = vrcp.pop %v1470
    %v1559 = vrcp.pop %v1479
    %v1560 = vrcp.pop %v1488
    %v1561 = vrcp.pop %v1497
    %v1562 = vrcp.pop %v1506
    %v1563 = vrcp.pop %v1515
    %v1564 = vrcp.pop %v1524
    %v1565 = vrcp.pop %v1533
    %v1566 = vrcp.pop %v1542
    %v1567 = vrcp.pop %v1551
    %v1568 = vmul.f32 %v1345, %v1552
    %v1569 = vmul.f32 %v1347, %v1552
    %v1570 = vmul.f32 %v1349, %v1553
    %v1571 = vmul.f32 %v1351, %v1553
    %v1572 = vmul.f32 %v1353, %v1554
    %v1573 = vmul.f32 %v1355, %v1554
    %v1574 = vmul.f32 %v1357, %v1555
    %v1575 = vmul.f32 %v1359, %v1555
    %v1576 = vmul.f32 %v1361, %v1556
    %v1577 = vmul.f32 %v1363, %v1556
    %v1578 = vmul.f32 %v1365, %v1557
    %v1579 = vmul.f32 %v1367, %v1557
    %v1580 = vmul.f32 %v1369, %v1558
    %v1581 = vmul.f32 %v1371, %v1558
    %v1582 = vmul.f32 %v1373, %v1559
    %v1583 = vmul.f32 %v1375, %v1559
    %v1584 = vmul.f32 %v1377, %v1560
    %v1585 = vmul.f32 %v1379, %v1560
    %v1586 = vmul.f32 %v1381, %v1561
    %v1587 = vmul.f32 %v1383, %v1561
    %v1588 = vmul.f32 %v1385, %v1562
    %v1589 = vmul.f32 %v1387, %v1562
    %v1590 = vmul.f32 %v1389, %v1563
    %v1591 = vmul.f32 %v1391, %v1563
    %v1592 = vmul.f32 %v1393, %v1564
    %v1593 = vmul.f32 %v1395, %v1564
    %v1594 = vmul.f32 %v1397, %v1565
    %v1595 = vmul.f32 %v1399, %v1565
    %v1596 = vmul.f32 %v1401, %v1566
    %v1597 = vmul.f32 %v1403, %v1566
    %v1598 = vmul.f32 %v1405, %v1567
    %v1599 = vmul.f32 %v1407, %v1567
    %1601 = vset.pattern.permute.xlu0 0
    %1602 = vperm.xlu0 %1601, %v1568
    %v1603 = vpop.permute.xlu0 %1602
    %1606 = vset.pattern.permute.xlu0 0
    %1607 = vperm.xlu0 %1606, %v1569
    %v1608 = vpop.permute.xlu0 %1607
    %1611 = vset.pattern.permute.xlu0 0
    %1612 = vperm.xlu0 %1611, %v1570
    %v1613 = vpop.permute.xlu0 %1612
    %1616 = vset.pattern.permute.xlu0 0
    %1617 = vperm.xlu0 %1616, %v1571
    %v1618 = vpop.permute.xlu0 %1617
    %1621 = vset.pattern.permute.xlu0 0
    %1622 = vperm.xlu0 %1621, %v1572
    %v1623 = vpop.permute.xlu0 %1622
    %1626 = vset.pattern.permute.xlu0 0
    %1627 = vperm.xlu0 %1626, %v1573
    %v1628 = vpop.permute.xlu0 %1627
    %1631 = vset.pattern.permute.xlu0 0
    %1632 = vperm.xlu0 %1631, %v1574
    %v1633 = vpop.permute.xlu0 %1632
    %1636 = vset.pattern.permute.xlu0 0
    %1637 = vperm.xlu0 %1636, %v1575
    %v1638 = vpop.permute.xlu0 %1637
    %1641 = vset.pattern.permute.xlu0 0
    %1642 = vperm.xlu0 %1641, %v1576
    %v1643 = vpop.permute.xlu0 %1642
    %1646 = vset.pattern.permute.xlu0 0
    %1647 = vperm.xlu0 %1646, %v1577
    %v1648 = vpop.permute.xlu0 %1647
    %1651 = vset.pattern.permute.xlu0 0
    %1652 = vperm.xlu0 %1651, %v1578
    %v1653 = vpop.permute.xlu0 %1652
    %1656 = vset.pattern.permute.xlu0 0
    %1657 = vperm.xlu0 %1656, %v1579
    %v1658 = vpop.permute.xlu0 %1657
    %1661 = vset.pattern.permute.xlu0 0
    %1662 = vperm.xlu0 %1661, %v1580
    %v1663 = vpop.permute.xlu0 %1662
    %1666 = vset.pattern.permute.xlu0 0
    %1667 = vperm.xlu0 %1666, %v1581
    %v1668 = vpop.permute.xlu0 %1667
    %1671 = vset.pattern.permute.xlu0 0
    %1672 = vperm.xlu0 %1671, %v1582
    %v1673 = vpop.permute.xlu0 %1672
    %1676 = vset.pattern.permute.xlu0 0
    %1677 = vperm.xlu0 %1676, %v1583
    %v1678 = vpop.permute.xlu0 %1677
    %1681 = vset.pattern.permute.xlu0 0
    %1682 = vperm.xlu0 %1681, %v1584
    %v1683 = vpop.permute.xlu0 %1682
    %1686 = vset.pattern.permute.xlu0 0
    %1687 = vperm.xlu0 %1686, %v1585
    %v1688 = vpop.permute.xlu0 %1687
    %1691 = vset.pattern.permute.xlu0 0
    %1692 = vperm.xlu0 %1691, %v1586
    %v1693 = vpop.permute.xlu0 %1692
    %1696 = vset.pattern.permute.xlu0 0
    %1697 = vperm.xlu0 %1696, %v1587
    %v1698 = vpop.permute.xlu0 %1697
    %1701 = vset.pattern.permute.xlu0 0
    %1702 = vperm.xlu0 %1701, %v1588
    %v1703 = vpop.permute.xlu0 %1702
    %1706 = vset.pattern.permute.xlu0 0
    %1707 = vperm.xlu0 %1706, %v1589
    %v1708 = vpop.permute.xlu0 %1707
    %1711 = vset.pattern.permute.xlu0 0
    %1712 = vperm.xlu0 %1711, %v1590
    %v1713 = vpop.permute.xlu0 %1712
    %1716 = vset.pattern.permute.xlu0 0
    %1717 = vperm.xlu0 %1716, %v1591
    %v1718 = vpop.permute.xlu0 %1717
    %1721 = vset.pattern.permute.xlu0 0
    %1722 = vperm.xlu0 %1721, %v1592
    %v1723 = vpop.permute.xlu0 %1722
    %1726 = vset.pattern.permute.xlu0 0
    %1727 = vperm.xlu0 %1726, %v1593
    %v1728 = vpop.permute.xlu0 %1727
    %1731 = vset.pattern.permute.xlu0 0
    %1732 = vperm.xlu0 %1731, %v1594
    %v1733 = vpop.permute.xlu0 %1732
    %1736 = vset.pattern.permute.xlu0 0
    %1737 = vperm.xlu0 %1736, %v1595
    %v1738 = vpop.permute.xlu0 %1737
    %1741 = vset.pattern.permute.xlu0 0
    %1742 = vperm.xlu0 %1741, %v1596
    %v1743 = vpop.permute.xlu0 %1742
    %1746 = vset.pattern.permute.xlu0 0
    %1747 = vperm.xlu0 %1746, %v1597
    %v1748 = vpop.permute.xlu0 %1747
    %1751 = vset.pattern.permute.xlu0 0
    %1752 = vperm.xlu0 %1751, %v1598
    %v1753 = vpop.permute.xlu0 %1752
    %1756 = vset.pattern.permute.xlu0 0
    %1757 = vperm.xlu0 %1756, %v1599
    %v1758 = vpop.permute.xlu0 %1757
    %v1760 = vmul.f32 %v709, %v1603
    %v1761 = vmul.f32 %v712, %v1608
    %v1762 = vmul.f32 %v717, %v1613
    %v1763 = vmul.f32 %v720, %v1618
    %v1764 = vmul.f32 %v725, %v1623
    %v1765 = vmul.f32 %v728, %v1628
    %v1766 = vmul.f32 %v733, %v1633
    %v1767 = vmul.f32 %v736, %v1638
    %v1768 = vmul.f32 %v741, %v1643
    %v1769 = vmul.f32 %v744, %v1648
    %v1770 = vmul.f32 %v749, %v1653
    %v1771 = vmul.f32 %v752, %v1658
    %v1772 = vmul.f32 %v757, %v1663
    %v1773 = vmul.f32 %v760, %v1668
    %v1774 = vmul.f32 %v765, %v1673
    %v1775 = vmul.f32 %v768, %v1678
    %v1776 = vmul.f32 %v773, %v1683
    %v1777 = vmul.f32 %v776, %v1688
    %v1778 = vmul.f32 %v781, %v1693
    %v1779 = vmul.f32 %v784, %v1698
    %v1780 = vmul.f32 %v789, %v1703
    %v1781 = vmul.f32 %v792, %v1708
    %v1782 = vmul.f32 %v797, %v1713
    %v1783 = vmul.f32 %v800, %v1718
    %v1784 = vmul.f32 %v805, %v1723
    %v1785 = vmul.f32 %v808, %v1728
    %v1786 = vmul.f32 %v813, %v1733
    %v1787 = vmul.f32 %v816, %v1738
    %v1788 = vmul.f32 %v821, %v1743
    %v1789 = vmul.f32 %v824, %v1748
    %v1790 = vmul.f32 %v829, %v1753
    %v1791 = vmul.f32 %v832, %v1758
    %v1792 = vsel %vm1036, %v1760, 0.0
    %v1793 = vsel %vm1036, %v1761, 0.0
    %v1794 = vadd.f32 %v1792, %v1793
    %v1795 = vrot.slane %v1794, 4
    %v1796 = vadd.f32 %v1794, %v1795
    %v1797 = vrot.slane %v1796, 2
    %v1798 = vadd.f32 %v1796, %v1797
    %v1799 = vrot.slane %v1798, 1
    %v1800 = vadd.f32 %v1798, %v1799
    %v1801 = vsel %vm1036, %v1762, 0.0
    %v1802 = vsel %vm1036, %v1763, 0.0
    %v1803 = vadd.f32 %v1801, %v1802
    %v1804 = vrot.slane %v1803, 4
    %v1805 = vadd.f32 %v1803, %v1804
    %v1806 = vrot.slane %v1805, 2
    %v1807 = vadd.f32 %v1805, %v1806
    %v1808 = vrot.slane %v1807, 1
    %v1809 = vadd.f32 %v1807, %v1808
    %v1810 = vsel %vm1036, %v1764, 0.0
    %v1811 = vsel %vm1036, %v1765, 0.0
    %v1812 = vadd.f32 %v1810, %v1811
    %v1813 = vrot.slane %v1812, 4
    %v1814 = vadd.f32 %v1812, %v1813
    %v1815 = vrot.slane %v1814, 2
    %v1816 = vadd.f32 %v1814, %v1815
    %v1817 = vrot.slane %v1816, 1
    %v1818 = vadd.f32 %v1816, %v1817
    %v1819 = vsel %vm1036, %v1766, 0.0
    %v1820 = vsel %vm1036, %v1767, 0.0
    %v1821 = vadd.f32 %v1819, %v1820
    %v1822 = vrot.slane %v1821, 4
    %v1823 = vadd.f32 %v1821, %v1822
    %v1824 = vrot.slane %v1823, 2
    %v1825 = vadd.f32 %v1823, %v1824
    %v1826 = vrot.slane %v1825, 1
    %v1827 = vadd.f32 %v1825, %v1826
    %v1828 = vsel %vm1036, %v1768, 0.0
    %v1829 = vsel %vm1036, %v1769, 0.0
    %v1830 = vadd.f32 %v1828, %v1829
    %v1831 = vrot.slane %v1830, 4
    %v1832 = vadd.f32 %v1830, %v1831
    %v1833 = vrot.slane %v1832, 2
    %v1834 = vadd.f32 %v1832, %v1833
    %v1835 = vrot.slane %v1834, 1
    %v1836 = vadd.f32 %v1834, %v1835
    %v1837 = vsel %vm1036, %v1770, 0.0
    %v1838 = vsel %vm1036, %v1771, 0.0
    %v1839 = vadd.f32 %v1837, %v1838
    %v1840 = vrot.slane %v1839, 4
    %v1841 = vadd.f32 %v1839, %v1840
    %v1842 = vrot.slane %v1841, 2
    %v1843 = vadd.f32 %v1841, %v1842
    %v1844 = vrot.slane %v1843, 1
    %v1845 = vadd.f32 %v1843, %v1844
    %v1846 = vsel %vm1036, %v1772, 0.0
    %v1847 = vsel %vm1036, %v1773, 0.0
    %v1848 = vadd.f32 %v1846, %v1847
    %v1849 = vrot.slane %v1848, 4
    %v1850 = vadd.f32 %v1848, %v1849
    %v1851 = vrot.slane %v1850, 2
    %v1852 = vadd.f32 %v1850, %v1851
    %v1853 = vrot.slane %v1852, 1
    %v1854 = vadd.f32 %v1852, %v1853
    %v1855 = vsel %vm1036, %v1774, 0.0
    %v1856 = vsel %vm1036, %v1775, 0.0
    %v1857 = vadd.f32 %v1855, %v1856
    %v1858 = vrot.slane %v1857, 4
    %v1859 = vadd.f32 %v1857, %v1858
    %v1860 = vrot.slane %v1859, 2
    %v1861 = vadd.f32 %v1859, %v1860
    %v1862 = vrot.slane %v1861, 1
    %v1863 = vadd.f32 %v1861, %v1862
    %v1864 = vsel %vm1036, %v1776, 0.0
    %v1865 = vsel %vm1036, %v1777, 0.0
    %v1866 = vadd.f32 %v1864, %v1865
    %v1867 = vrot.slane %v1866, 4
    %v1868 = vadd.f32 %v1866, %v1867
    %v1869 = vrot.slane %v1868, 2
    %v1870 = vadd.f32 %v1868, %v1869
    %v1871 = vrot.slane %v1870, 1
    %v1872 = vadd.f32 %v1870, %v1871
    %v1873 = vsel %vm1036, %v1778, 0.0
    %v1874 = vsel %vm1036, %v1779, 0.0
    %v1875 = vadd.f32 %v1873, %v1874
    %v1876 = vrot.slane %v1875, 4
    %v1877 = vadd.f32 %v1875, %v1876
    %v1878 = vrot.slane %v1877, 2
    %v1879 = vadd.f32 %v1877, %v1878
    %v1880 = vrot.slane %v1879, 1
    %v1881 = vadd.f32 %v1879, %v1880
    %v1882 = vsel %vm1036, %v1780, 0.0
    %v1883 = vsel %vm1036, %v1781, 0.0
    %v1884 = vadd.f32 %v1882, %v1883
    %v1885 = vrot.slane %v1884, 4
    %v1886 = vadd.f32 %v1884, %v1885
    %v1887 = vrot.slane %v1886, 2
    %v1888 = vadd.f32 %v1886, %v1887
    %v1889 = vrot.slane %v1888, 1
    %v1890 = vadd.f32 %v1888, %v1889
    %v1891 = vsel %vm1036, %v1782, 0.0
    %v1892 = vsel %vm1036, %v1783, 0.0
    %v1893 = vadd.f32 %v1891, %v1892
    %v1894 = vrot.slane %v1893, 4
    %v1895 = vadd.f32 %v1893, %v1894
    %v1896 = vrot.slane %v1895, 2
    %v1897 = vadd.f32 %v1895, %v1896
    %v1898 = vrot.slane %v1897, 1
    %v1899 = vadd.f32 %v1897, %v1898
    %v1900 = vsel %vm1036, %v1784, 0.0
    %v1901 = vsel %vm1036, %v1785, 0.0
    %v1902 = vadd.f32 %v1900, %v1901
    %v1903 = vrot.slane %v1902, 4
    %v1904 = vadd.f32 %v1902, %v1903
    %v1905 = vrot.slane %v1904, 2
    %v1906 = vadd.f32 %v1904, %v1905
    %v1907 = vrot.slane %v1906, 1
    %v1908 = vadd.f32 %v1906, %v1907
    %v1909 = vsel %vm1036, %v1786, 0.0
    %v1910 = vsel %vm1036, %v1787, 0.0
    %v1911 = vadd.f32 %v1909, %v1910
    %v1912 = vrot.slane %v1911, 4
    %v1913 = vadd.f32 %v1911, %v1912
    %v1914 = vrot.slane %v1913, 2
    %v1915 = vadd.f32 %v1913, %v1914
    %v1916 = vrot.slane %v1915, 1
    %v1917 = vadd.f32 %v1915, %v1916
    %v1918 = vsel %vm1036, %v1788, 0.0
    %v1919 = vsel %vm1036, %v1789, 0.0
    %v1920 = vadd.f32 %v1918, %v1919
    %v1921 = vrot.slane %v1920, 4
    %v1922 = vadd.f32 %v1920, %v1921
    %v1923 = vrot.slane %v1922, 2
    %v1924 = vadd.f32 %v1922, %v1923
    %v1925 = vrot.slane %v1924, 1
    %v1926 = vadd.f32 %v1924, %v1925
    %v1927 = vsel %vm1036, %v1790, 0.0
    %v1928 = vsel %vm1036, %v1791, 0.0
    %v1929 = vadd.f32 %v1927, %v1928
    %v1930 = vrot.slane %v1929, 4
    %v1931 = vadd.f32 %v1929, %v1930
    %v1932 = vrot.slane %v1931, 2
    %v1933 = vadd.f32 %v1931, %v1932
    %v1934 = vrot.slane %v1933, 1
    %v1935 = vadd.f32 %v1933, %v1934
    %v1936 = vld [vmem:[%s5] sm:$0xff]
    %v1937 = vld [vmem:[%s5 + $0x8] sm:$0xff]
    %v1938 = vld [vmem:[%s5 + $0x10] sm:$0xff]
    %v1939 = vld [vmem:[%s5 + $0x18] sm:$0xff]
    %v1940 = vld [vmem:[%s6] sm:$0x1]
    %v1942 = vlaneseq
    %v1943 = vshrl.u32 %v1942, 7
    %v1944 = vsub.s32 0, %v1943
    %v1945 = vrot.slane %v1940, %v1944
    %vm1963 = vcmask 1041409
    %v1964 = vsel %vm1963, %v1809, %v1800
    %vm1965 = vcmask 1042434
    %v1966 = vsel %vm1965, %v1818, %v1964
    %vm1967 = vcmask 1043459
    %v1968 = vsel %vm1967, %v1827, %v1966
    %vm1969 = vcmask 1044484
    %v1970 = vsel %vm1969, %v1836, %v1968
    %vm1971 = vcmask 1045509
    %v1972 = vsel %vm1971, %v1845, %v1970
    %vm1973 = vcmask 1046534
    %v1974 = vsel %vm1973, %v1854, %v1972
    %vm1975 = vcmask 1047559
    %v1976 = vsel %vm1975, %v1863, %v1974
    %v1977 = vsel %vm1963, %v1881, %v1872
    %v1978 = vsel %vm1965, %v1890, %v1977
    %v1979 = vsel %vm1967, %v1899, %v1978
    %v1980 = vsel %vm1969, %v1908, %v1979
    %v1981 = vsel %vm1971, %v1917, %v1980
    %v1982 = vsel %vm1973, %v1926, %v1981
    %v1983 = vsel %vm1975, %v1935, %v1982
    %v1984 = vsel %vm1036, %v1976, 0
    %v1986 = vsel %vm1036, %v1983, 0
    %1988 = vmatprep.subr.mxu0 0.0
    %1989 = vmatpush1.msra.mxu0 %v1936
    %1990 = vmatprep.subr.mxu0 0.0
    %1991 = vmatpush1.msra.mxu0 %v1937
    %1992 = vmatprep.subr.mxu0 0.0
    %1993 = vmatpush1.msra.mxu0 %v1938
    %1994 = vmatprep.subr.mxu0 0.0
    %1995 = vmatpush1.msra.mxu0 %v1939
    %1996 = vmatprep.subr.mxu0 0.0
    %1997 = vmatpush1.msra.mxu0 0.0
    %1998 = vmatprep.subr.mxu0 0.0
    %1999 = vmatpush1.msra.mxu0 0.0
    %2000 = vmatprep.subr.mxu0 0.0
    %2001 = vmatpush1.msra.mxu0 0.0
    %2002 = vmatprep.subr.mxu0 0.0
    %2003 = vmatpush1.msra.mxu0 0.0
    %2004 = vmatprep.subr.mxu0 0.0
    %2005 = vmatpush1.msra.mxu0 0.0
    %2006 = vmatprep.subr.mxu0 0.0
    %2007 = vmatpush1.msra.mxu0 0.0
    %2008 = vmatprep.subr.mxu0 0.0
    %2009 = vmatpush1.msra.mxu0 0.0
    %2010 = vmatprep.subr.mxu0 0.0
    %2011 = vmatpush1.msra.mxu0 0.0
    %2012 = vmatprep.subr.mxu0 0.0
    %2013 = vmatpush1.msra.mxu0 0.0
    %2014 = vmatprep.subr.mxu0 0.0
    %2015 = vmatpush1.msra.mxu0 0.0
    %2016 = vmatprep.subr.mxu0 0.0
    %2017 = vmatpush1.msra.mxu0 0.0
    %2018 = vmatprep.subr.mxu0 0.0
    %2019 = vmatpush1.msra.mxu0 0.0
    %2020 = vmatprep.subr.mxu0 0.0
    %2021 = vmatpush1.msra.mxu0 0.0
    %2022 = vmatprep.subr.mxu0 0.0
    %2023 = vmatpush1.msra.mxu0 0.0
    %2024 = vmatprep.subr.mxu0 0.0
    %2025 = vmatpush1.msra.mxu0 0.0
    %2026 = vmatprep.subr.mxu0 0.0
    %2027 = vmatpush1.msra.mxu0 0.0
    %2028 = vmatprep.subr.mxu0 0.0
    %2029 = vmatpush1.msra.mxu0 0.0
    %2030 = vmatprep.subr.mxu0 0.0
    %2031 = vmatpush1.msra.mxu0 0.0
    %2032 = vmatprep.subr.mxu0 0.0
    %2033 = vmatpush1.msra.mxu0 0.0
    %2034 = vmatprep.subr.mxu0 0.0
    %2035 = vmatpush1.msra.mxu0 0.0
    %2036 = vmatprep.subr.mxu0 0.0
    %2037 = vmatpush1.msra.mxu0 0.0
    %2038 = vmatprep.subr.mxu0 0.0
    %2039 = vmatpush1.msra.mxu0 0.0
    %2040 = vmatprep.subr.mxu0 0.0
    %2041 = vmatpush1.msra.mxu0 0.0
    %2042 = vmatprep.subr.mxu0 0.0
    %2043 = vmatpush1.msra.mxu0 0.0
    %2044 = vmatprep.subr.mxu0 0.0
    %2045 = vmatpush1.msra.mxu0 0.0
    %2046 = vmatprep.subr.mxu0 0.0
    %2047 = vmatpush1.msra.mxu0 0.0
    %2048 = vmatprep.subr.mxu0 0.0
    %2049 = vmatpush1.msra.mxu0 0.0
    %2050 = vmatprep.subr.mxu0 0.0
    %2051 = vmatpush1.msra.mxu0 0.0
    %2052 = vmatprep.mubr.f32.mxu0 0.0
    %2053 = vmatmul.mubr.f32.gmra.mrb[0].mxu0 %v1984
    %v2054 = vpop.f32.mrb[0].mxu0
    %v2055 = vadd.f32 %v1945, %v2054
    %v2056 = vpop.f32.mrb[0].mxu0
    %2057 = vmatprep.mubr.f32.mxu0 0.0
    %2058 = vmatmul.mubr.f32.gmra.mrb[0].mxu0 %v1986
    %v2059 = vpop.f32.mrb[0].mxu0
    %v2060 = vadd.f32 %v1945, %v2059
    %v2061 = vpop.f32.mrb[0].mxu0
    %2062 = vdwg.mxu0
    %2063 = vmax.xlane.f32.xlu0 %v2055
    %v2064 = vpop.xlane.xlu0 %2063
    %2065 = vmax.xlane.f32.xlu0 %v2060
    %v2066 = vpop.xlane.xlu0 %2065
    %v2067 = vsub.f32 %v2055, %v2064
    %v2068 = vsub.f32 %v2060, %v2066
    %v2069 = vmul.f32 %v2067, 1.442695
    %v2070 = vpow.pop %v2069
    %v2071 = vmul.f32 %v2068, 1.442695
    %v2072 = vpow.pop %v2071
    %2073 = vadd.xlane.f32.xlu0 %v2070
    %v2074 = vpop.xlane.xlu0 %2073
    %2075 = vadd.xlane.f32.xlu0 %v2072
    %v2076 = vpop.xlane.xlu0 %2075
    %v2077 = vrcp.pop %v2074
    %v2078 = vmul.f32 %v2070, %v2077
    %v2079 = vrcp.pop %v2076
    %v2080 = vmul.f32 %v2072, %v2079
    %2081 = vst [vmem:[#allocation2] sm:$0xff] %v2078
    %2082 = vst [vmem:[#allocation2 + $0x8] sm:$0xff] %v2080
    // Predicated region
    $region30: #{tpu_custom_call.1} parent=1 // pred_check
      _
    $region31: #{tpu_custom_call.1} parent=1 // pred_check_branch
      %2084 = sbr.rel (0) target = $region33
    $region32: #{tpu_custom_call.1} parent=1 // pred_region
      %s2086 = ssub.s32 256, 256
      %2087 = vsyncadd [#allocation3], %s2086
      %s2088 = sshll.u32 [#allocation2], 4
      %s2089 = int_to_ptr.vmem [resolvable:$true] %s2088
      %2094 = dma.vmem_to_hbm [thread:$0]  %s2089, 256, %s7, [#allocation3], 128, 128, 8
    $region33: #{tpu_custom_call.1} parent=1 // pred_fallthru
      _
    // Predicated region
    $region34: #{tpu_custom_call.1} parent=1 // pred_check
      _
    $region35: #{tpu_custom_call.1} parent=1 // pred_check_branch
      %2096 = sbr.rel (0) target = $region37
    $region36: #{tpu_custom_call.1} parent=1 // pred_region
      %2097 = dma.done [#allocation3], 256
    $region37: #{tpu_custom_call.1} parent=1 // pred_fallthru
      _
    %2098 = vsyncpa [#allocation3], 1

</llo_original>
